<compile_context>
chip_gen: v7x
topology: tpu7x:2x2x1
jax: 0.10.0
libtpu: 0.0.40
codegen_flags: <defaults>
</compile_context>

<pallas_src>
import functools

import numpy as np

import jax
import jax.numpy as jnp
from jax.experimental import pallas as pl
from jax.experimental.pallas import tpu as pltpu

NEG_SLOPE = 0.01   # nn.LeakyReLU() default
BN_EPS = 1e-5      # nn.BatchNorm3d default
CLAMP_MAX = 50.0

# --------- architecture constants (derived from the synthetic encoder) -----
IN_CHANNELS = 2
INPUT_DIMS = (8, 8, 8)
LATENT_DIM = 16
FIRST_OUT_CHANNELS = 8
COMPRESSED_SHAPE = (1, 1, 1)
COMPRESSED_SIZE = FIRST_OUT_CHANNELS * 1 * 1 * 1  # 8
# (out_channels, kernel_size, stride) per deconv layer, in forward order
DECONV_CFG = [
    (8, 3, 1),            # mirrors encoder block1
    (IN_CHANNELS, 3, 2),  # mirrors encoder block0 (out_channels = in_channels)
]

# derived spatial sizes
L0_DIM = (1 - 1) * DECONV_CFG[0][2] + DECONV_CFG[0][1]       # 3
L1_DIM = (L0_DIM - 1) * DECONV_CFG[1][2] + DECONV_CFG[1][1]  # 7
L0_SP = L0_DIM ** 3                                          # 27
L1_SP = L1_DIM ** 3                                          # 343
L0_COLS = FIRST_OUT_CHANNELS * L0_SP                         # 216
L1_COLS = IN_CHANNELS * L1_SP                                # 686


def _pad128(n):
    return ((n + 127) // 128) * 128


L0_PAD = _pad128(L0_COLS)    # 256 (matches v6e/v7x 256-wide MXU, 2x128 on v5e)
L1_PAD = _pad128(L1_COLS)    # 768


# ----------------------------- Pallas kernel --------------------------------
def _bn_group_fused(x, gamma, beta, gm, gt, inv_b):
    """One-pass training-mode BatchNorm over contiguous channel-column groups.

    x     : (B, n_cols_pad) f32, column index = channel*group_size + sp
            (padded columns are zero and belong to no group).
    gamma : (1, n_groups) f32     beta : (1, n_groups) f32
    gm    : (n_cols_pad, n_groups) one-hot membership with 1/group_size folded
            in (zero rows for padded columns)  — precomputed host-side.
    gt    : (n_groups, n_cols_pad) one-hot broadcast (zero cols for padding).
    inv_b : python float 1/B (static).
    Group reduce / broadcast rides the otherwise-idle MXU; no lane reshapes.
    """
    s1 = jnp.sum(x, axis=0, keepdims=True)                    # (1, n_cols)
    s2 = jnp.sum(x * x, axis=0, keepdims=True)                # (1, n_cols)
    mg = jnp.dot(s1, gm, preferred_element_type=jnp.float32) * inv_b   # mean/grp
    eg = jnp.dot(s2, gm, preferred_element_type=jnp.float32) * inv_b   # E[x^2]/grp
    var_g = eg - mg * mg                                       # biased variance
    scale_g = jax.lax.rsqrt(var_g + BN_EPS) * gamma            # (1, n_groups)
    shift_g = beta - mg * scale_g                              # (1, n_groups)
    scale_w = jnp.dot(scale_g, gt, preferred_element_type=jnp.float32)
    shift_w = jnp.dot(shift_g, gt, preferred_element_type=jnp.float32)
    return x * scale_w + shift_w                               # padded cols -> 0


def _decoder_kernel(z_ref, wf_ref, bf_ref, g0_ref, be0_ref, gm0_ref, gt0_ref,
                    w1_ref, b1_ref, g1_ref, be1_ref, gm1_ref, gt1_ref,
                    o_ref, *, inv_b):
    # ---- Linear + ConvTranspose0 (fused affine): (B,16) @ (16,256) f32 ----
    y0 = (jnp.dot(z_ref[...], wf_ref[...], preferred_element_type=jnp.float32)
          + bf_ref[...])
    a0 = jnp.where(y0 >= 0.0, y0, NEG_SLOPE * y0)              # LeakyReLU
    x0 = _bn_group_fused(a0, g0_ref[...], be0_ref[...],
                         gm0_ref[...], gt0_ref[...], inv_b)    # BatchNorm3d(8)

    # ---- ConvTranspose1 folded dense: (B,256)bf16 @ (256,768)bf16 -> f32 ----
    y1 = (jnp.dot(x0.astype(jnp.bfloat16), w1_ref[...],
                  preferred_element_type=jnp.float32)
          + b1_ref[...])
    a1 = jnp.where(y1 >= 0.0, y1, NEG_SLOPE * y1)              # LeakyReLU
    x1 = _bn_group_fused(a1, g1_ref[...], be1_ref[...],
                         gm1_ref[...], gt1_ref[...], inv_b)    # BatchNorm3d(2)

    o_ref[...] = jnp.minimum(x1, CLAMP_MAX)                    # clamp(max=50)


# ------------------------------- wrapper ------------------------------------
@jax.jit
def image_decoder_3d_forward(z, prep):
    """z: (B, latent_dim) -> (B, IN_CHANNELS, 7, 7, 7), NCDHW."""
    B = z.shape[0]
    kernel = functools.partial(_decoder_kernel, inv_b=1.0 / B)
    inputs = (z, prep["wf"], prep["bf"], prep["g0"], prep["be0"],
              prep["gm0"], prep["gt0"],
              prep["w1"], prep["b1"], prep["g1"], prep["be1"],
              prep["gm1"], prep["gt1"])
    flops = 2 * B * (LATENT_DIM * L0_PAD + L0_PAD * L1_PAD) \
        + 10 * B * (L0_PAD + L1_PAD)
    bytes_accessed = sum(int(a.size) * a.dtype.itemsize for a in inputs) \
        + B * L1_PAD * 4
    out_flat = pl.pallas_call(
        kernel,
        out_shape=jax.ShapeDtypeStruct((B, L1_PAD), jnp.float32),
        in_specs=[pl.BlockSpec(memory_space=pltpu.MemorySpace.VMEM)] * len(inputs),
        out_specs=pl.BlockSpec(memory_space=pltpu.MemorySpace.VMEM),
        cost_estimate=pl.CostEstimate(
            flops=int(flops),
            transcendentals=FIRST_OUT_CHANNELS + IN_CHANNELS,
            bytes_accessed=int(bytes_accessed)),
    )(*inputs)
    # drop lane padding; column layout is NCDHW-flat (co*343 + od*49 + oh*7 + ow)
    # so the final reshape is a contiguous view.
    return out_flat[:, :L1_COLS].reshape(B, IN_CHANNELS, L1_DIM, L1_DIM, L1_DIM)


# ------------------ one-time parameter preparation (hoisted) -----------------
def _build_deconv_matrix(w, stride, in_dim, out_dim):
    """Dense (Cin*in_dim^3, Cout*out_dim^3) matrix realizing ConvTranspose3d.

    w: PyTorch ConvTranspose3d weight (Cin, Cout, k, k, k), padding=0.
    Row = ci*in_sp + flat(id,ih,iw);  Col = co*out_sp + flat(od,oh,ow).
    """
    cin, cout, k = w.shape[0], w.shape[1], w.shape[2]
    n_in, n_out = in_dim ** 3, out_dim ** 3
    big = np.zeros((cin * n_in, cout * n_out), np.float64)
    for ci in range(cin):
        for idd in range(in_dim):
            for ih in range(in_dim):
                for iw in range(in_dim):
                    row = ci * n_in + (idd * in_dim + ih) * in_dim + iw
                    for co in range(cout):
                        for kd in range(k):
                            od = idd * stride + kd
                            for kh in range(k):
                                oh = ih * stride + kh
                                for kw in range(k):
                                    ow = iw * stride + kw
                                    col = (co * n_out
                                           + (od * out_dim + oh) * out_dim + ow)
                                    big[row, col] = w[ci, co, kd, kh, kw]
    return big


def _group_matrices(n_groups, group_size, n_cols_pad):
    """One-hot group reduce (with 1/group_size folded) and broadcast matrices.

    Padded columns (>= n_groups*group_size) get all-zero rows/cols so they are
    excluded from BN statistics and forced to zero by the BN apply step.
    """
    gm = np.zeros((n_cols_pad, n_groups), np.float32)
    gt = np.zeros((n_groups, n_cols_pad), np.float32)
    for g in range(n_groups):
        gm[g * group_size:(g + 1) * group_size, g] = 1.0 / group_size
        gt[g, g * group_size:(g + 1) * group_size] = 1.0
    return gm, gt


def prepare_decoder_params(params):
    """Hoist all weight preprocessing out of the forward pass (done once)."""
    lin_w = np.asarray(params["lin_w"], np.float64)   # (8, 16) PyTorch (out,in)
    lin_b = np.asarray(params["lin_b"], np.float64)   # (8,)
    w0 = np.asarray(params["dw0"], np.float64)        # (8, 8, 3, 3, 3)
    db0 = np.asarray(params["db0"], np.float64)       # (8,)
    k0 = DECONV_CFG[0][1]
    # ConvTranspose over a (1,1,1) input == matmul with W0 reshaped (Cin, Cout*27)
    w0mat = w0.reshape(w0.shape[0], -1)               # col = co*27 + sp
    wf = lin_w.T @ w0mat                              # (16, 216) fused Linear+deconv0
    bf = lin_b @ w0mat + np.repeat(db0, k0 ** 3)      # (216,)
    wf_pad = np.zeros((LATENT_DIM, L0_PAD), np.float32)
    wf_pad[:, :L0_COLS] = wf
    bf_pad = np.zeros((L0_PAD,), np.float32)
    bf_pad[:L0_COLS] = bf

    w1 = np.asarray(params["dw1"], np.float64)        # (8, 2, 3, 3, 3)
    db1 = np.asarray(params["db1"], np.float64)       # (2,)
    wbig = _build_deconv_matrix(w1, stride=DECONV_CFG[1][2],
                                in_dim=L0_DIM, out_dim=L1_DIM)   # (216, 686)
    w1_pad = np.zeros((L0_PAD, L1_PAD), np.float32)
    w1_pad[:L0_COLS, :L1_COLS] = wbig
    b1_pad = np.zeros((L1_PAD,), np.float32)
    b1_pad[:L1_COLS] = np.repeat(db1, L1_SP)

    gm0, gt0 = _group_matrices(FIRST_OUT_CHANNELS, L0_SP, L0_PAD)
    gm1, gt1 = _group_matrices(IN_CHANNELS, L1_SP, L1_PAD)

    return {
        "wf": jnp.asarray(wf_pad, jnp.float32),                  # (16, 256)
        "bf": jnp.asarray(bf_pad, jnp.float32)[None, :],         # (1, 256)
        "g0": jnp.asarray(params["g0"], jnp.float32)[None, :],   # (1, 8)
        "be0": jnp.asarray(params["b0"], jnp.float32)[None, :],  # (1, 8)
        "gm0": jnp.asarray(gm0), "gt0": jnp.asarray(gt0),
        "w1": jnp.asarray(w1_pad, jnp.bfloat16),                 # (256, 768) bf16
        "b1": jnp.asarray(b1_pad, jnp.float32)[None, :],         # (1, 768)
        "g1": jnp.asarray(params["g1"], jnp.float32)[None, :],   # (1, 2)
        "be1": jnp.asarray(params["b1"], jnp.float32)[None, :],  # (1, 2)
        "gm1": jnp.asarray(gm1), "gt1": jnp.asarray(gt1),
    }


# ------------------------- deterministic parameters -------------------------
def make_params(key):
    ks = jax.random.split(key, 12)
    params = {
        "lin_w": 0.1 * jax.random.normal(ks[0], (COMPRESSED_SIZE, LATENT_DIM), jnp.float32),
        "lin_b": 0.1 * jax.random.normal(ks[1], (COMPRESSED_SIZE,), jnp.float32),
    }
    cin = FIRST_OUT_CHANNELS
    for li, (cout, k, _s) in enumerate(DECONV_CFG):
        params[f"dw{li}"] = 0.1 * jax.random.normal(
            ks[2 + 4 * li], (cin, cout, k, k, k), jnp.float32)
        params[f"db{li}"] = 0.1 * jax.random.normal(ks[3 + 4 * li], (cout,), jnp.float32)
        params[f"g{li}"] = 1.0 + 0.1 * jax.random.normal(ks[4 + 4 * li], (cout,), jnp.float32)
        params[f"b{li}"] = 0.1 * jax.random.normal(ks[5 + 4 * li], (cout,), jnp.float32)
        cin = cout
    return params


# -------------------------- pure-JAX reference ------------------------------
def _conv_transpose3d_ref(x, w, b, stride):
    # ConvTranspose3d == dilated correlation with the flipped kernel.
    k = w.shape[2]
    wf = w[:, :, ::-1, ::-1, ::-1].transpose(1, 0, 2, 3, 4)   # (Cout, Cin, k,k,k)
    y = jax.lax.conv_general_dilated(
        x, wf, window_strides=(1, 1, 1),
        padding=[(k - 1, k - 1)] * 3,
        lhs_dilation=(stride, stride, stride),
        dimension_numbers=("NCDHW", "OIDHW", "NCDHW"),
        precision=jax.lax.Precision.HIGHEST)
    return y + b.reshape(1, -1, 1, 1, 1)


def reference_forward(z, params):
    h = jnp.matmul(z, params["lin_w"].T, precision=jax.lax.Precision.HIGHEST)
    h = h + params["lin_b"]
    x = h.reshape(z.shape[0], FIRST_OUT_CHANNELS, *COMPRESSED_SHAPE)
    for li, (cout, k, s) in enumerate(DECONV_CFG):
        x = _conv_transpose3d_ref(x, params[f"dw{li}"], params[f"db{li}"], s)
        x = jnp.where(x >= 0.0, x, NEG_SLOPE * x)
        mean = jnp.mean(x, axis=(0, 2, 3, 4), keepdims=True)
        var = jnp.mean((x - mean) ** 2, axis=(0, 2, 3, 4), keepdims=True)
        x = (x - mean) * jax.lax.rsqrt(var + BN_EPS)
        x = (x * params[f"g{li}"].reshape(1, -1, 1, 1, 1)
             + params[f"b{li}"].reshape(1, -1, 1, 1, 1))
    return jnp.minimum(x, CLAMP_MAX)


if __name__ == "__main__":
    key = jax.random.PRNGKey(0)
    pkey, zkey = jax.random.split(key)
    params = make_params(pkey)
    prep = prepare_decoder_params(params)   # one-time weight preprocessing

    batch = 2
    z = jax.random.normal(zkey, (batch, LATENT_DIM), jnp.float32)

    out = image_decoder_3d_forward(z, prep)
    out = jax.block_until_ready(out)

    expected = (batch, IN_CHANNELS, L1_DIM, L1_DIM, L1_DIM)
    assert out.shape == expected, f"bad shape {out.shape} != {expected}"
    assert out.dtype == jnp.float32
    assert bool(jnp.all(out <= CLAMP_MAX)), "clamp(max=50) violated"
    assert bool(jnp.all(jnp.isfinite(out))), "non-finite output"

    ref = reference_forward(z, params)
    max_err = float(jnp.max(jnp.abs(out - ref)))
    # bf16 operands on the (256,768) matmul with f32 accumulation keep the
    # error well below this bound (observed/estimated ~1e-2).
    assert max_err < 5e-2, f"mismatch vs reference: max |err| = {max_err}"

    print("KERNEL_OK")
</pallas_src>

<mosaic_0001>
module attributes {stable_mosaic.version = 11 : i64} {
  func.func @_decoder_kernel(%arg0: memref<2x16xf32, #tpu.memory_space<vmem>>, %arg1: memref<16x256xf32, #tpu.memory_space<vmem>>, %arg2: memref<1x256xf32, #tpu.memory_space<vmem>>, %arg3: memref<1x8xf32, #tpu.memory_space<vmem>>, %arg4: memref<1x8xf32, #tpu.memory_space<vmem>>, %arg5: memref<256x8xf32, #tpu.memory_space<vmem>>, %arg6: memref<8x256xf32, #tpu.memory_space<vmem>>, %arg7: memref<256x768xbf16, #tpu.memory_space<vmem>>, %arg8: memref<1x768xf32, #tpu.memory_space<vmem>>, %arg9: memref<1x2xf32, #tpu.memory_space<vmem>>, %arg10: memref<1x2xf32, #tpu.memory_space<vmem>>, %arg11: memref<768x2xf32, #tpu.memory_space<vmem>>, %arg12: memref<2x768xf32, #tpu.memory_space<vmem>>, %arg13: memref<2x768xf32, #tpu.memory_space<vmem>>) attributes {dimension_semantics = [], scalar_prefetch = 0 : i64, scratch_operands = 0 : i64, tpu.core_type = #tpu.core_type<tc>} {
    %c0 = arith.constant 0 : index
    %c0_0 = arith.constant 0 : index
    %0 = vector.load %arg0[%c0, %c0_0] : memref<2x16xf32, #tpu.memory_space<vmem>>, vector<2x16xf32>
    %c0_1 = arith.constant 0 : index
    %c0_2 = arith.constant 0 : index
    %1 = vector.load %arg1[%c0_1, %c0_2] : memref<16x256xf32, #tpu.memory_space<vmem>>, vector<16x256xf32>
    %cst = arith.constant dense<0.000000e+00> : vector<2x256xf32>
    %2 = tpu.matmul %0, %1, %cst {dimension_numbers = #tpu.dot_dimension_numbers<[1], [0], [0], [1], [0, 0, 1, 1], [], []>} : vector<2x16xf32>, vector<16x256xf32>, vector<2x256xf32> -> vector<2x256xf32>
    %c0_3 = arith.constant 0 : index
    %c0_4 = arith.constant 0 : index
    %3 = vector.load %arg2[%c0_3, %c0_4] : memref<1x256xf32, #tpu.memory_space<vmem>>, vector<1x256xf32>
    %4 = vector.broadcast %3 : vector<1x256xf32> to vector<2x256xf32>
    %5 = arith.addf %2, %4 : vector<2x256xf32>
    %cst_5 = arith.constant 0.000000e+00 : f32
    %6 = vector.broadcast %cst_5 : f32 to vector<2x256xf32>
    %7 = arith.cmpf oge, %5, %6 : vector<2x256xf32>
    %cst_6 = arith.constant 0.00999999977 : f32
    %8 = vector.broadcast %cst_6 : f32 to vector<2x256xf32>
    %9 = arith.mulf %8, %5 : vector<2x256xf32>
    %10 = arith.select %7, %5, %9 : vector<2x256xi1>, vector<2x256xf32>
    %c0_7 = arith.constant 0 : index
    %c0_8 = arith.constant 0 : index
    %11 = vector.load %arg3[%c0_7, %c0_8] : memref<1x8xf32, #tpu.memory_space<vmem>>, vector<1x8xf32>
    %c0_9 = arith.constant 0 : index
    %c0_10 = arith.constant 0 : index
    %12 = vector.load %arg4[%c0_9, %c0_10] : memref<1x8xf32, #tpu.memory_space<vmem>>, vector<1x8xf32>
    %c0_11 = arith.constant 0 : index
    %c0_12 = arith.constant 0 : index
    %13 = vector.load %arg5[%c0_11, %c0_12] : memref<256x8xf32, #tpu.memory_space<vmem>>, vector<256x8xf32>
    %c0_13 = arith.constant 0 : index
    %c0_14 = arith.constant 0 : index
    %14 = vector.load %arg6[%c0_13, %c0_14] : memref<8x256xf32, #tpu.memory_space<vmem>>, vector<8x256xf32>
    %cst_15 = arith.constant dense<0.000000e+00> : vector<256xf32>
    %15 = vector.multi_reduction <add>, %10, %cst_15 [0] : vector<2x256xf32> to vector<256xf32>
    %16 = vector.shape_cast %15 : vector<256xf32> to vector<1x256xf32>
    %17 = arith.mulf %10, %10 : vector<2x256xf32>
    %cst_16 = arith.constant dense<0.000000e+00> : vector<256xf32>
    %18 = vector.multi_reduction <add>, %17, %cst_16 [0] : vector<2x256xf32> to vector<256xf32>
    %19 = vector.shape_cast %18 : vector<256xf32> to vector<1x256xf32>
    %cst_17 = arith.constant dense<0.000000e+00> : vector<1x8xf32>
    %20 = tpu.matmul %16, %13, %cst_17 {dimension_numbers = #tpu.dot_dimension_numbers<[1], [0], [0], [1], [0, 0, 1, 1], [], []>} : vector<1x256xf32>, vector<256x8xf32>, vector<1x8xf32> -> vector<1x8xf32>
    %cst_18 = arith.constant 5.000000e-01 : f32
    %21 = vector.broadcast %cst_18 : f32 to vector<1x8xf32>
    %22 = arith.mulf %20, %21 : vector<1x8xf32>
    %cst_19 = arith.constant dense<0.000000e+00> : vector<1x8xf32>
    %23 = tpu.matmul %19, %13, %cst_19 {dimension_numbers = #tpu.dot_dimension_numbers<[1], [0], [0], [1], [0, 0, 1, 1], [], []>} : vector<1x256xf32>, vector<256x8xf32>, vector<1x8xf32> -> vector<1x8xf32>
    %cst_20 = arith.constant 5.000000e-01 : f32
    %24 = vector.broadcast %cst_20 : f32 to vector<1x8xf32>
    %25 = arith.mulf %23, %24 : vector<1x8xf32>
    %26 = arith.mulf %22, %22 : vector<1x8xf32>
    %27 = arith.subf %25, %26 : vector<1x8xf32>
    %cst_21 = arith.constant 9.99999974E-6 : f32
    %28 = vector.broadcast %cst_21 : f32 to vector<1x8xf32>
    %29 = arith.addf %27, %28 : vector<1x8xf32>
    %30 = math.rsqrt %29 : vector<1x8xf32>
    %31 = arith.mulf %30, %11 : vector<1x8xf32>
    %32 = arith.mulf %22, %31 : vector<1x8xf32>
    %33 = arith.subf %12, %32 : vector<1x8xf32>
    %cst_22 = arith.constant dense<0.000000e+00> : vector<1x256xf32>
    %34 = tpu.matmul %31, %14, %cst_22 {dimension_numbers = #tpu.dot_dimension_numbers<[1], [0], [0], [1], [0, 0, 1, 1], [], []>} : vector<1x8xf32>, vector<8x256xf32>, vector<1x256xf32> -> vector<1x256xf32>
    %cst_23 = arith.constant dense<0.000000e+00> : vector<1x256xf32>
    %35 = tpu.matmul %33, %14, %cst_23 {dimension_numbers = #tpu.dot_dimension_numbers<[1], [0], [0], [1], [0, 0, 1, 1], [], []>} : vector<1x8xf32>, vector<8x256xf32>, vector<1x256xf32> -> vector<1x256xf32>
    %36 = vector.broadcast %34 : vector<1x256xf32> to vector<2x256xf32>
    %37 = arith.mulf %10, %36 : vector<2x256xf32>
    %38 = vector.broadcast %35 : vector<1x256xf32> to vector<2x256xf32>
    %39 = arith.addf %37, %38 : vector<2x256xf32>
    %40 = arith.truncf %39 : vector<2x256xf32> to vector<2x256xbf16>
    %c0_24 = arith.constant 0 : index
    %c0_25 = arith.constant 0 : index
    %41 = vector.load %arg7[%c0_24, %c0_25] : memref<256x768xbf16, #tpu.memory_space<vmem>>, vector<256x768xbf16>
    %cst_26 = arith.constant dense<0.000000e+00> : vector<2x768xf32>
    %42 = tpu.matmul %40, %41, %cst_26 {dimension_numbers = #tpu.dot_dimension_numbers<[1], [0], [0], [1], [0, 0, 1, 1], [], []>} : vector<2x256xbf16>, vector<256x768xbf16>, vector<2x768xf32> -> vector<2x768xf32>
    %c0_27 = arith.constant 0 : index
    %c0_28 = arith.constant 0 : index
    %43 = vector.load %arg8[%c0_27, %c0_28] : memref<1x768xf32, #tpu.memory_space<vmem>>, vector<1x768xf32>
    %44 = vector.broadcast %43 : vector<1x768xf32> to vector<2x768xf32>
    %45 = arith.addf %42, %44 : vector<2x768xf32>
    %cst_29 = arith.constant 0.000000e+00 : f32
    %46 = vector.broadcast %cst_29 : f32 to vector<2x768xf32>
    %47 = arith.cmpf oge, %45, %46 : vector<2x768xf32>
    %cst_30 = arith.constant 0.00999999977 : f32
    %48 = vector.broadcast %cst_30 : f32 to vector<2x768xf32>
    %49 = arith.mulf %48, %45 : vector<2x768xf32>
    %50 = arith.select %47, %45, %49 : vector<2x768xi1>, vector<2x768xf32>
    %c0_31 = arith.constant 0 : index
    %c0_32 = arith.constant 0 : index
    %51 = vector.load %arg9[%c0_31, %c0_32] : memref<1x2xf32, #tpu.memory_space<vmem>>, vector<1x2xf32>
    %c0_33 = arith.constant 0 : index
    %c0_34 = arith.constant 0 : index
    %52 = vector.load %arg10[%c0_33, %c0_34] : memref<1x2xf32, #tpu.memory_space<vmem>>, vector<1x2xf32>
    %c0_35 = arith.constant 0 : index
    %c0_36 = arith.constant 0 : index
    %53 = vector.load %arg11[%c0_35, %c0_36] : memref<768x2xf32, #tpu.memory_space<vmem>>, vector<768x2xf32>
    %c0_37 = arith.constant 0 : index
    %c0_38 = arith.constant 0 : index
    %54 = vector.load %arg12[%c0_37, %c0_38] : memref<2x768xf32, #tpu.memory_space<vmem>>, vector<2x768xf32>
    %cst_39 = arith.constant dense<0.000000e+00> : vector<768xf32>
    %55 = vector.multi_reduction <add>, %50, %cst_39 [0] : vector<2x768xf32> to vector<768xf32>
    %56 = vector.shape_cast %55 : vector<768xf32> to vector<1x768xf32>
    %57 = arith.mulf %50, %50 : vector<2x768xf32>
    %cst_40 = arith.constant dense<0.000000e+00> : vector<768xf32>
    %58 = vector.multi_reduction <add>, %57, %cst_40 [0] : vector<2x768xf32> to vector<768xf32>
    %59 = vector.shape_cast %58 : vector<768xf32> to vector<1x768xf32>
    %cst_41 = arith.constant dense<0.000000e+00> : vector<1x2xf32>
    %60 = tpu.matmul %56, %53, %cst_41 {dimension_numbers = #tpu.dot_dimension_numbers<[1], [0], [0], [1], [0, 0, 1, 1], [], []>} : vector<1x768xf32>, vector<768x2xf32>, vector<1x2xf32> -> vector<1x2xf32>
    %cst_42 = arith.constant 5.000000e-01 : f32
    %61 = vector.broadcast %cst_42 : f32 to vector<1x2xf32>
    %62 = arith.mulf %60, %61 : vector<1x2xf32>
    %cst_43 = arith.constant dense<0.000000e+00> : vector<1x2xf32>
    %63 = tpu.matmul %59, %53, %cst_43 {dimension_numbers = #tpu.dot_dimension_numbers<[1], [0], [0], [1], [0, 0, 1, 1], [], []>} : vector<1x768xf32>, vector<768x2xf32>, vector<1x2xf32> -> vector<1x2xf32>
    %cst_44 = arith.constant 5.000000e-01 : f32
    %64 = vector.broadcast %cst_44 : f32 to vector<1x2xf32>
    %65 = arith.mulf %63, %64 : vector<1x2xf32>
    %66 = arith.mulf %62, %62 : vector<1x2xf32>
    %67 = arith.subf %65, %66 : vector<1x2xf32>
    %cst_45 = arith.constant 9.99999974E-6 : f32
    %68 = vector.broadcast %cst_45 : f32 to vector<1x2xf32>
    %69 = arith.addf %67, %68 : vector<1x2xf32>
    %70 = math.rsqrt %69 : vector<1x2xf32>
    %71 = arith.mulf %70, %51 : vector<1x2xf32>
    %72 = arith.mulf %62, %71 : vector<1x2xf32>
    %73 = arith.subf %52, %72 : vector<1x2xf32>
    %cst_46 = arith.constant dense<0.000000e+00> : vector<1x768xf32>
    %74 = tpu.matmul %71, %54, %cst_46 {dimension_numbers = #tpu.dot_dimension_numbers<[1], [0], [0], [1], [0, 0, 1, 1], [], []>} : vector<1x2xf32>, vector<2x768xf32>, vector<1x768xf32> -> vector<1x768xf32>
    %cst_47 = arith.constant dense<0.000000e+00> : vector<1x768xf32>
    %75 = tpu.matmul %73, %54, %cst_47 {dimension_numbers = #tpu.dot_dimension_numbers<[1], [0], [0], [1], [0, 0, 1, 1], [], []>} : vector<1x2xf32>, vector<2x768xf32>, vector<1x768xf32> -> vector<1x768xf32>
    %76 = vector.broadcast %74 : vector<1x768xf32> to vector<2x768xf32>
    %77 = arith.mulf %50, %76 : vector<2x768xf32>
    %78 = vector.broadcast %75 : vector<1x768xf32> to vector<2x768xf32>
    %79 = arith.addf %77, %78 : vector<2x768xf32>
    %cst_48 = arith.constant 5.000000e+01 : f32
    %80 = vector.broadcast %cst_48 : f32 to vector<2x768xf32>
    %81 = arith.minimumf %79, %80 : vector<2x768xf32>
    %c0_49 = arith.constant 0 : index
    %c0_50 = arith.constant 0 : index
    %82 = vector.load %arg13[%c0_49, %c0_50] : memref<2x768xf32, #tpu.memory_space<vmem>>, vector<2x768xf32>
    tpu.vector_store %arg13[%c0_49, %c0_50], %81 {strides = array<i32>} : memref<2x768xf32, #tpu.memory_space<vmem>>, vector<2x768xf32>,
    return
  }
}

</mosaic_0001>

<llo_original>
// kernel: image_decoder_3d_forward.1
$region0: #{image_decoder_3d_forward.1}
  #allocation0 [shape = 'u32[]', space=smem, size = 0x4, offset = 0x4, fixed_abs, tag = 'smem constant byte address 0x4 - core index']
  #allocation1 [shape = 'u32[144,128]{1,0:T(1,128)}', space=vmem, size = 0x12000, scoped, tag = 'internal scratch']
  %s0 = inlined_call_operand.vmem [shape: f32[2,16], index: 0, kind: input, shape index: {}]
  %s1 = inlined_call_operand.vmem [shape: f32[16,256], index: 1, kind: input, shape index: {}]
  %s2 = inlined_call_operand.vmem [shape: f32[1,256], index: 2, kind: input, shape index: {}]
  %s3 = inlined_call_operand.vmem [shape: f32[1,8], index: 3, kind: input, shape index: {}]
  %s4 = inlined_call_operand.vmem [shape: f32[1,8], index: 4, kind: input, shape index: {}]
  %s5 = inlined_call_operand.vmem [shape: f32[256,8], index: 5, kind: input, shape index: {}]
  %s6 = inlined_call_operand.vmem [shape: f32[8,256], index: 6, kind: input, shape index: {}]
  %s7 = inlined_call_operand.vmem [shape: bf16[256,768], index: 7, kind: input, shape index: {}]
  %s8 = inlined_call_operand.vmem [shape: f32[1,768], index: 8, kind: input, shape index: {}]
  %s9 = inlined_call_operand.vmem [shape: f32[1,2], index: 9, kind: input, shape index: {}]
  %s10 = inlined_call_operand.vmem [shape: f32[1,2], index: 10, kind: input, shape index: {}]
  %s11 = inlined_call_operand.vmem [shape: f32[768,2], index: 11, kind: input, shape index: {}]
  %s12 = inlined_call_operand.vmem [shape: f32[2,768], index: 12, kind: input, shape index: {}]
  %s13 = inlined_call_operand.vmem [shape: f32[2,768], index: 13, kind: output, shape index: {}]
  %s14 = sld [smem:[#allocation0]]
  $region62: #{image_decoder_3d_forward.1} parent=0
    _
  %s16 = ssub.s32 1, %s14
  %s17 = scalar_select 0, %s16, %s14
  // Predicated region
  $region2: #{image_decoder_3d_forward.1} parent=0 // pred_check
    _
  $region3: #{image_decoder_3d_forward.1} parent=0 // pred_check_branch
    %19 = sbr.rel (0) target = $region5
  $region4: #{image_decoder_3d_forward.1} parent=0 // pred_region
    _
  $region5: #{image_decoder_3d_forward.1} parent=0 // pred_fallthru
    _
  // Predicated region
  $region6: #{image_decoder_3d_forward.1} parent=0 // pred_check
    _
  $region7: #{image_decoder_3d_forward.1} parent=0 // pred_check_branch
    %21 = sbr.rel (0) target = $region9
  $region8: #{image_decoder_3d_forward.1} parent=0 // pred_region
    _
  $region9: #{image_decoder_3d_forward.1} parent=0 // pred_fallthru
    _
  // Predicated region
  $region10: #{image_decoder_3d_forward.1} parent=0 // pred_check
    _
  $region11: #{image_decoder_3d_forward.1} parent=0 // pred_check_branch
    %23 = sbr.rel (0) target = $region13
  $region12: #{image_decoder_3d_forward.1} parent=0 // pred_region
    _
  $region13: #{image_decoder_3d_forward.1} parent=0 // pred_fallthru
    _
  // Predicated region
  $region14: #{image_decoder_3d_forward.1} parent=0 // pred_check
    _
  $region15: #{image_decoder_3d_forward.1} parent=0 // pred_check_branch
    %25 = sbr.rel (0) target = $region17
  $region16: #{image_decoder_3d_forward.1} parent=0 // pred_region
    _
  $region17: #{image_decoder_3d_forward.1} parent=0 // pred_fallthru
    _
  // Predicated region
  $region18: #{image_decoder_3d_forward.1} parent=0 // pred_check
    _
  $region19: #{image_decoder_3d_forward.1} parent=0 // pred_check_branch
    %27 = sbr.rel (0) target = $region21
  $region20: #{image_decoder_3d_forward.1} parent=0 // pred_region
    _
  $region21: #{image_decoder_3d_forward.1} parent=0 // pred_fallthru
    _
  // Predicated region
  $region22: #{image_decoder_3d_forward.1} parent=0 // pred_check
    _
  $region23: #{image_decoder_3d_forward.1} parent=0 // pred_check_branch
    %29 = sbr.rel (0) target = $region25
  $region24: #{image_decoder_3d_forward.1} parent=0 // pred_region
    _
  $region25: #{image_decoder_3d_forward.1} parent=0 // pred_fallthru
    _
  // Predicated region
  $region26: #{image_decoder_3d_forward.1} parent=0 // pred_check
    _
  $region27: #{image_decoder_3d_forward.1} parent=0 // pred_check_branch
    %31 = sbr.rel (0) target = $region29
  $region28: #{image_decoder_3d_forward.1} parent=0 // pred_region
    _
  $region29: #{image_decoder_3d_forward.1} parent=0 // pred_fallthru
    _
  // Predicated region
  $region30: #{image_decoder_3d_forward.1} parent=0 // pred_check
    _
  $region31: #{image_decoder_3d_forward.1} parent=0 // pred_check_branch
    %33 = sbr.rel (0) target = $region33
  $region32: #{image_decoder_3d_forward.1} parent=0 // pred_region
    _
  $region33: #{image_decoder_3d_forward.1} parent=0 // pred_fallthru
    _
  // Predicated region
  $region34: #{image_decoder_3d_forward.1} parent=0 // pred_check
    _
  $region35: #{image_decoder_3d_forward.1} parent=0 // pred_check_branch
    %35 = sbr.rel (0) target = $region37
  $region36: #{image_decoder_3d_forward.1} parent=0 // pred_region
    _
  $region37: #{image_decoder_3d_forward.1} parent=0 // pred_fallthru
    _
  // Predicated region
  $region38: #{image_decoder_3d_forward.1} parent=0 // pred_check
    _
  $region39: #{image_decoder_3d_forward.1} parent=0 // pred_check_branch
    %37 = sbr.rel (0) target = $region41
  $region40: #{image_decoder_3d_forward.1} parent=0 // pred_region
    _
  $region41: #{image_decoder_3d_forward.1} parent=0 // pred_fallthru
    _
  // Predicated region
  $region42: #{image_decoder_3d_forward.1} parent=0 // pred_check
    _
  $region43: #{image_decoder_3d_forward.1} parent=0 // pred_check_branch
    %39 = sbr.rel (0) target = $region45
  $region44: #{image_decoder_3d_forward.1} parent=0 // pred_region
    _
  $region45: #{image_decoder_3d_forward.1} parent=0 // pred_fallthru
    _
  // Predicated region
  $region46: #{image_decoder_3d_forward.1} parent=0 // pred_check
    _
  $region47: #{image_decoder_3d_forward.1} parent=0 // pred_check_branch
    %41 = sbr.rel (0) target = $region49
  $region48: #{image_decoder_3d_forward.1} parent=0 // pred_region
    _
  $region49: #{image_decoder_3d_forward.1} parent=0 // pred_fallthru
    _
  // Predicated region
  $region50: #{image_decoder_3d_forward.1} parent=0 // pred_check
    _
  $region51: #{image_decoder_3d_forward.1} parent=0 // pred_check_branch
    %43 = sbr.rel (0) target = $region53
  $region52: #{image_decoder_3d_forward.1} parent=0 // pred_region
    _
  $region53: #{image_decoder_3d_forward.1} parent=0 // pred_fallthru
    _
  %v44 = vld [vmem:[%s0] sm:$0x3]
  %v45 = vld [vmem:[%s1] sm:$0xff]
  %v46 = vld [vmem:[%s1 + $0x8] sm:$0xff]
  %v47 = vld [vmem:[%s1 + $0x10] sm:$0xff]
  %v48 = vld [vmem:[%s1 + $0x18] sm:$0xff]
  %v49 = vld [vmem:[%s2] sm:$0x3]
  %v51 = vlaneseq
  %v52 = vshrl.u32 %v51, 7
  %v53 = vsub.s32 0, %v52
  %v54 = vrot.slane %v49, %v53
  %v55 = vlaneseq
  %v56 = vshrl.u32 %v55, 7
  %v57 = vsub.s32 1, %v56
  %v58 = vrot.slane %v49, %v57
  %vm61 = vcmask 130048
  %v63 = vsel %vm61, %v44, 0
  %65 = vmatprep.subr.mxu0 %v46
  %66 = vmatpush1.msra.mxu0 %v45
  %67 = vmatprep.subr.mxu0 %v48
  %68 = vmatpush1.msra.mxu0 %v47
  %69 = vmatprep.subr.mxu0 0.0
  %70 = vmatpush1.msra.mxu0 0.0
  %71 = vmatprep.subr.mxu0 0.0
  %72 = vmatpush1.msra.mxu0 0.0
  %73 = vmatprep.subr.mxu0 0.0
  %74 = vmatpush1.msra.mxu0 0.0
  %75 = vmatprep.subr.mxu0 0.0
  %76 = vmatpush1.msra.mxu0 0.0
  %77 = vmatprep.subr.mxu0 0.0
  %78 = vmatpush1.msra.mxu0 0.0
  %79 = vmatprep.subr.mxu0 0.0
  %80 = vmatpush1.msra.mxu0 0.0
  %81 = vmatprep.subr.mxu0 0.0
  %82 = vmatpush1.msra.mxu0 0.0
  %83 = vmatprep.subr.mxu0 0.0
  %84 = vmatpush1.msra.mxu0 0.0
  %85 = vmatprep.subr.mxu0 0.0
  %86 = vmatpush1.msra.mxu0 0.0
  %87 = vmatprep.subr.mxu0 0.0
  %88 = vmatpush1.msra.mxu0 0.0
  %89 = vmatprep.subr.mxu0 0.0
  %90 = vmatpush1.msra.mxu0 0.0
  %91 = vmatprep.subr.mxu0 0.0
  %92 = vmatpush1.msra.mxu0 0.0
  %93 = vmatprep.subr.mxu0 0.0
  %94 = vmatpush1.msra.mxu0 0.0
  %95 = vmatprep.subr.mxu0 0.0
  %96 = vmatpush1.msra.mxu0 0.0
  %97 = vmatprep.subr.mxu0 0.0
  %98 = vmatpush1.msra.mxu0 0.0
  %99 = vmatprep.subr.mxu0 0.0
  %100 = vmatpush1.msra.mxu0 0.0
  %101 = vmatprep.subr.mxu0 0.0
  %102 = vmatpush1.msra.mxu0 0.0
  %103 = vmatprep.subr.mxu0 0.0
  %104 = vmatpush1.msra.mxu0 0.0
  %105 = vmatprep.subr.mxu0 0.0
  %106 = vmatpush1.msra.mxu0 0.0
  %107 = vmatprep.subr.mxu0 0.0
  %108 = vmatpush1.msra.mxu0 0.0
  %109 = vmatprep.subr.mxu0 0.0
  %110 = vmatpush1.msra.mxu0 0.0
  %111 = vmatprep.subr.mxu0 0.0
  %112 = vmatpush1.msra.mxu0 0.0
  %113 = vmatprep.subr.mxu0 0.0
  %114 = vmatpush1.msra.mxu0 0.0
  %115 = vmatprep.subr.mxu0 0.0
  %116 = vmatpush1.msra.mxu0 0.0
  %117 = vmatprep.subr.mxu0 0.0
  %118 = vmatpush1.msra.mxu0 0.0
  %119 = vmatprep.subr.mxu0 0.0
  %120 = vmatpush1.msra.mxu0 0.0
  %121 = vmatprep.subr.mxu0 0.0
  %122 = vmatpush1.msra.mxu0 0.0
  %123 = vmatprep.subr.mxu0 0.0
  %124 = vmatpush1.msra.mxu0 0.0
  %125 = vmatprep.subr.mxu0 0.0
  %126 = vmatpush1.msra.mxu0 0.0
  %127 = vmatprep.subr.mxu0 0.0
  %128 = vmatpush1.msra.mxu0 0.0
  %129 = vmatprep.mubr.f32.mxu0 0.0
  %130 = vmatmul.mubr.f32.gmra.mrb[0].mxu0 %v63
  %v131 = vpop.f32.mrb[0].mxu0
  %v132 = vadd.f32 %v54, %v131
  %v133 = vpop.f32.mrb[0].mxu0
  %v134 = vadd.f32 %v58, %v133
  %135 = vdwg.mxu0
  %vm136 = vcmp.ge.f32.partialorder %v132, 0.0
  %vm137 = vcmp.ge.f32.partialorder %v134, 0.0
  %v138 = vmul.f32 %v132, 0.01
  %v139 = vmul.f32 %v134, 0.01
  %v140 = vsel %vm136, %v132, %v138
  %v141 = vsel %vm137, %v134, %v139
  %v142 = vld [vmem:[%s3] sm:$0x1]
  %v143 = vld [vmem:[%s4] sm:$0x1]
  %v144 = vld [vmem:[%s5] sm:$0xff]
  %v145 = vld [vmem:[%s5 + $0x8] sm:$0xff]
  %v146 = vld [vmem:[%s5 + $0x10] sm:$0xff]
  %v147 = vld [vmem:[%s5 + $0x18] sm:$0xff]
  %v148 = vld [vmem:[%s5 + $0x20] sm:$0xff]
  %v149 = vld [vmem:[%s5 + $0x28] sm:$0xff]
  %v150 = vld [vmem:[%s5 + $0x30] sm:$0xff]
  %v151 = vld [vmem:[%s5 + $0x38] sm:$0xff]
  %v152 = vld [vmem:[%s5 + $0x40] sm:$0xff]
  %v153 = vld [vmem:[%s5 + $0x48] sm:$0xff]
  %v154 = vld [vmem:[%s5 + $0x50] sm:$0xff]
  %v155 = vld [vmem:[%s5 + $0x58] sm:$0xff]
  %v156 = vld [vmem:[%s5 + $0x60] sm:$0xff]
  %v157 = vld [vmem:[%s5 + $0x68] sm:$0xff]
  %v158 = vld [vmem:[%s5 + $0x70] sm:$0xff]
  %v159 = vld [vmem:[%s5 + $0x78] sm:$0xff]
  %v160 = vld [vmem:[%s5 + $0x80] sm:$0xff]
  %v161 = vld [vmem:[%s5 + $0x88] sm:$0xff]
  %v162 = vld [vmem:[%s5 + $0x90] sm:$0xff]
  %v163 = vld [vmem:[%s5 + $0x98] sm:$0xff]
  %v164 = vld [vmem:[%s5 + $0xa0] sm:$0xff]
  %v165 = vld [vmem:[%s5 + $0xa8] sm:$0xff]
  %v166 = vld [vmem:[%s5 + $0xb0] sm:$0xff]
  %v167 = vld [vmem:[%s5 + $0xb8] sm:$0xff]
  %v168 = vld [vmem:[%s5 + $0xc0] sm:$0xff]
  %v169 = vld [vmem:[%s5 + $0xc8] sm:$0xff]
  %v170 = vld [vmem:[%s5 + $0xd0] sm:$0xff]
  %v171 = vld [vmem:[%s5 + $0xd8] sm:$0xff]
  %v172 = vld [vmem:[%s5 + $0xe0] sm:$0xff]
  %v173 = vld [vmem:[%s5 + $0xe8] sm:$0xff]
  %v174 = vld [vmem:[%s5 + $0xf0] sm:$0xff]
  %v175 = vld [vmem:[%s5 + $0xf8] sm:$0xff]
  %v176 = vld [vmem:[%s6] sm:$0xff]
  %v177 = vld [vmem:[%s6 + $0x8] sm:$0xff]
  %vm178 = vcmask 1041408
  %v179 = vsel %vm178, %v140, 0.0
  %v180 = vrot.slane %v179, 4
  %v181 = vadd.f32 %v179, %v180
  %v182 = vrot.slane %v181, 2
  %v183 = vadd.f32 %v181, %v182
  %v184 = vrot.slane %v183, 1
  %v185 = vadd.f32 %v183, %v184
  %v186 = vsel %vm178, %v141, 0.0
  %v187 = vrot.slane %v186, 4
  %v188 = vadd.f32 %v186, %v187
  %v189 = vrot.slane %v188, 2
  %v190 = vadd.f32 %v188, %v189
  %v191 = vrot.slane %v190, 1
  %v192 = vadd.f32 %v190, %v191
  %v193 = vmul.f32 %v140, %v140
  %v194 = vmul.f32 %v141, %v141
  %v195 = vsel %vm178, %v193, 0.0
  %v196 = vrot.slane %v195, 4
  %v197 = vadd.f32 %v195, %v196
  %v198 = vrot.slane %v197, 2
  %v199 = vadd.f32 %v197, %v198
  %v200 = vrot.slane %v199, 1
  %v201 = vadd.f32 %v199, %v200
  %v202 = vsel %vm178, %v194, 0.0
  %v203 = vrot.slane %v202, 4
  %v204 = vadd.f32 %v202, %v203
  %v205 = vrot.slane %v204, 2
  %v206 = vadd.f32 %v204, %v205
  %v207 = vrot.slane %v206, 1
  %v208 = vadd.f32 %v206, %v207
  %209 = vmatprep.subr.mxu0 0.0
  %210 = vmatpush1.msra.mxu0 %v144
  %211 = vmatprep.subr.mxu0 0.0
  %212 = vmatpush1.msra.mxu0 %v145
  %213 = vmatprep.subr.mxu0 0.0
  %214 = vmatpush1.msra.mxu0 %v146
  %215 = vmatprep.subr.mxu0 0.0
  %216 = vmatpush1.msra.mxu0 %v147
  %217 = vmatprep.subr.mxu0 0.0
  %218 = vmatpush1.msra.mxu0 %v148
  %219 = vmatprep.subr.mxu0 0.0
  %220 = vmatpush1.msra.mxu0 %v149
  %221 = vmatprep.subr.mxu0 0.0
  %222 = vmatpush1.msra.mxu0 %v150
  %223 = vmatprep.subr.mxu0 0.0
  %224 = vmatpush1.msra.mxu0 %v151
  %225 = vmatprep.subr.mxu0 0.0
  %226 = vmatpush1.msra.mxu0 %v152
  %227 = vmatprep.subr.mxu0 0.0
  %228 = vmatpush1.msra.mxu0 %v153
  %229 = vmatprep.subr.mxu0 0.0
  %230 = vmatpush1.msra.mxu0 %v154
  %231 = vmatprep.subr.mxu0 0.0
  %232 = vmatpush1.msra.mxu0 %v155
  %233 = vmatprep.subr.mxu0 0.0
  %234 = vmatpush1.msra.mxu0 %v156
  %235 = vmatprep.subr.mxu0 0.0
  %236 = vmatpush1.msra.mxu0 %v157
  %237 = vmatprep.subr.mxu0 0.0
  %238 = vmatpush1.msra.mxu0 %v158
  %239 = vmatprep.subr.mxu0 0.0
  %240 = vmatpush1.msra.mxu0 %v159
  %241 = vmatprep.subr.mxu0 0.0
  %242 = vmatpush1.msra.mxu0 %v160
  %243 = vmatprep.subr.mxu0 0.0
  %244 = vmatpush1.msra.mxu0 %v161
  %245 = vmatprep.subr.mxu0 0.0
  %246 = vmatpush1.msra.mxu0 %v162
  %247 = vmatprep.subr.mxu0 0.0
  %248 = vmatpush1.msra.mxu0 %v163
  %249 = vmatprep.subr.mxu0 0.0
  %250 = vmatpush1.msra.mxu0 %v164
  %251 = vmatprep.subr.mxu0 0.0
  %252 = vmatpush1.msra.mxu0 %v165
  %253 = vmatprep.subr.mxu0 0.0
  %254 = vmatpush1.msra.mxu0 %v166
  %255 = vmatprep.subr.mxu0 0.0
  %256 = vmatpush1.msra.mxu0 %v167
  %257 = vmatprep.subr.mxu0 0.0
  %258 = vmatpush1.msra.mxu0 %v168
  %259 = vmatprep.subr.mxu0 0.0
  %260 = vmatpush1.msra.mxu0 %v169
  %261 = vmatprep.subr.mxu0 0.0
  %262 = vmatpush1.msra.mxu0 %v170
  %263 = vmatprep.subr.mxu0 0.0
  %264 = vmatpush1.msra.mxu0 %v171
  %265 = vmatprep.subr.mxu0 0.0
  %266 = vmatpush1.msra.mxu0 %v172
  %267 = vmatprep.subr.mxu0 0.0
  %268 = vmatpush1.msra.mxu0 %v173
  %269 = vmatprep.subr.mxu0 0.0
  %270 = vmatpush1.msra.mxu0 %v174
  %271 = vmatprep.subr.mxu0 0.0
  %272 = vmatpush1.msra.mxu0 %v175
  %273 = vmatprep.mubr.f32.mxu0 %v192
  %274 = vmatmul.mubr.f32.gmra.mrb[0].mxu0 %v185
  %v275 = vpop.f32.mrb[0].mxu0
  %v276 = vadd.f32 0.0, %v275
  %v277 = vpop.f32.mrb[0].mxu0
  %278 = vdwg.mxu0
  %v279 = vmul.f32 %v276, 0.5
  %280 = vmatprep.subr.mxu0 0.0
  %281 = vmatpush1.msra.mxu0 %v144
  %282 = vmatprep.subr.mxu0 0.0
  %283 = vmatpush1.msra.mxu0 %v145
  %284 = vmatprep.subr.mxu0 0.0
  %285 = vmatpush1.msra.mxu0 %v146
  %286 = vmatprep.subr.mxu0 0.0
  %287 = vmatpush1.msra.mxu0 %v147
  %288 = vmatprep.subr.mxu0 0.0
  %289 = vmatpush1.msra.mxu0 %v148
  %290 = vmatprep.subr.mxu0 0.0
  %291 = vmatpush1.msra.mxu0 %v149
  %292 = vmatprep.subr.mxu0 0.0
  %293 = vmatpush1.msra.mxu0 %v150
  %294 = vmatprep.subr.mxu0 0.0
  %295 = vmatpush1.msra.mxu0 %v151
  %296 = vmatprep.subr.mxu0 0.0
  %297 = vmatpush1.msra.mxu0 %v152
  %298 = vmatprep.subr.mxu0 0.0
  %299 = vmatpush1.msra.mxu0 %v153
  %300 = vmatprep.subr.mxu0 0.0
  %301 = vmatpush1.msra.mxu0 %v154
  %302 = vmatprep.subr.mxu0 0.0
  %303 = vmatpush1.msra.mxu0 %v155
  %304 = vmatprep.subr.mxu0 0.0
  %305 = vmatpush1.msra.mxu0 %v156
  %306 = vmatprep.subr.mxu0 0.0
  %307 = vmatpush1.msra.mxu0 %v157
  %308 = vmatprep.subr.mxu0 0.0
  %309 = vmatpush1.msra.mxu0 %v158
  %310 = vmatprep.subr.mxu0 0.0
  %311 = vmatpush1.msra.mxu0 %v159
  %312 = vmatprep.subr.mxu0 0.0
  %313 = vmatpush1.msra.mxu0 %v160
  %314 = vmatprep.subr.mxu0 0.0
  %315 = vmatpush1.msra.mxu0 %v161
  %316 = vmatprep.subr.mxu0 0.0
  %317 = vmatpush1.msra.mxu0 %v162
  %318 = vmatprep.subr.mxu0 0.0
  %319 = vmatpush1.msra.mxu0 %v163
  %320 = vmatprep.subr.mxu0 0.0
  %321 = vmatpush1.msra.mxu0 %v164
  %322 = vmatprep.subr.mxu0 0.0
  %323 = vmatpush1.msra.mxu0 %v165
  %324 = vmatprep.subr.mxu0 0.0
  %325 = vmatpush1.msra.mxu0 %v166
  %326 = vmatprep.subr.mxu0 0.0
  %327 = vmatpush1.msra.mxu0 %v167
  %328 = vmatprep.subr.mxu0 0.0
  %329 = vmatpush1.msra.mxu0 %v168
  %330 = vmatprep.subr.mxu0 0.0
  %331 = vmatpush1.msra.mxu0 %v169
  %332 = vmatprep.subr.mxu0 0.0
  %333 = vmatpush1.msra.mxu0 %v170
  %334 = vmatprep.subr.mxu0 0.0
  %335 = vmatpush1.msra.mxu0 %v171
  %336 = vmatprep.subr.mxu0 0.0
  %337 = vmatpush1.msra.mxu0 %v172
  %338 = vmatprep.subr.mxu0 0.0
  %339 = vmatpush1.msra.mxu0 %v173
  %340 = vmatprep.subr.mxu0 0.0
  %341 = vmatpush1.msra.mxu0 %v174
  %342 = vmatprep.subr.mxu0 0.0
  %343 = vmatpush1.msra.mxu0 %v175
  %344 = vmatprep.mubr.f32.mxu0 %v208
  %345 = vmatmul.mubr.f32.gmra.mrb[0].mxu0 %v201
  %v346 = vpop.f32.mrb[0].mxu0
  %v347 = vadd.f32 0.0, %v346
  %v348 = vpop.f32.mrb[0].mxu0
  %349 = vdwg.mxu0
  %v350 = vmul.f32 %v347, 0.5
  %v351 = vmul.f32 %v279, %v279
  %v352 = vsub.f32 %v350, %v351
  %v353 = vadd.f32 %v352, 1e-05
  %v354 = vrsqrt.pop %v353
  %v355 = vmul.f32 %v354, %v142
  %v356 = vmul.f32 %v279, %v355
  %v357 = vsub.f32 %v143, %v356
  %vm358 = vcmask 64512
  %v360 = vsel %vm358, %v355, 0
  %362 = vmatprep.subr.mxu0 %v177
  %363 = vmatpush1.msra.mxu0 %v176
  %364 = vmatprep.subr.mxu0 0.0
  %365 = vmatpush1.msra.mxu0 0.0
  %366 = vmatprep.subr.mxu0 0.0
  %367 = vmatpush1.msra.mxu0 0.0
  %368 = vmatprep.subr.mxu0 0.0
  %369 = vmatpush1.msra.mxu0 0.0
  %370 = vmatprep.subr.mxu0 0.0
  %371 = vmatpush1.msra.mxu0 0.0
  %372 = vmatprep.subr.mxu0 0.0
  %373 = vmatpush1.msra.mxu0 0.0
  %374 = vmatprep.subr.mxu0 0.0
  %375 = vmatpush1.msra.mxu0 0.0
  %376 = vmatprep.subr.mxu0 0.0
  %377 = vmatpush1.msra.mxu0 0.0
  %378 = vmatprep.subr.mxu0 0.0
  %379 = vmatpush1.msra.mxu0 0.0
  %380 = vmatprep.subr.mxu0 0.0
  %381 = vmatpush1.msra.mxu0 0.0
  %382 = vmatprep.subr.mxu0 0.0
  %383 = vmatpush1.msra.mxu0 0.0
  %384 = vmatprep.subr.mxu0 0.0
  %385 = vmatpush1.msra.mxu0 0.0
  %386 = vmatprep.subr.mxu0 0.0
  %387 = vmatpush1.msra.mxu0 0.0
  %388 = vmatprep.subr.mxu0 0.0
  %389 = vmatpush1.msra.mxu0 0.0
  %390 = vmatprep.subr.mxu0 0.0
  %391 = vmatpush1.msra.mxu0 0.0
  %392 = vmatprep.subr.mxu0 0.0
  %393 = vmatpush1.msra.mxu0 0.0
  %394 = vmatprep.subr.mxu0 0.0
  %395 = vmatpush1.msra.mxu0 0.0
  %396 = vmatprep.subr.mxu0 0.0
  %397 = vmatpush1.msra.mxu0 0.0
  %398 = vmatprep.subr.mxu0 0.0
  %399 = vmatpush1.msra.mxu0 0.0
  %400 = vmatprep.subr.mxu0 0.0
  %401 = vmatpush1.msra.mxu0 0.0
  %402 = vmatprep.subr.mxu0 0.0
  %403 = vmatpush1.msra.mxu0 0.0
  %404 = vmatprep.subr.mxu0 0.0
  %405 = vmatpush1.msra.mxu0 0.0
  %406 = vmatprep.subr.mxu0 0.0
  %407 = vmatpush1.msra.mxu0 0.0
  %408 = vmatprep.subr.mxu0 0.0
  %409 = vmatpush1.msra.mxu0 0.0
  %410 = vmatprep.subr.mxu0 0.0
  %411 = vmatpush1.msra.mxu0 0.0
  %412 = vmatprep.subr.mxu0 0.0
  %413 = vmatpush1.msra.mxu0 0.0
  %414 = vmatprep.subr.mxu0 0.0
  %415 = vmatpush1.msra.mxu0 0.0
  %416 = vmatprep.subr.mxu0 0.0
  %417 = vmatpush1.msra.mxu0 0.0
  %418 = vmatprep.subr.mxu0 0.0
  %419 = vmatpush1.msra.mxu0 0.0
  %420 = vmatprep.subr.mxu0 0.0
  %421 = vmatpush1.msra.mxu0 0.0
  %422 = vmatprep.subr.mxu0 0.0
  %423 = vmatpush1.msra.mxu0 0.0
  %424 = vmatprep.subr.mxu0 0.0
  %425 = vmatpush1.msra.mxu0 0.0
  %426 = vmatprep.mubr.f32.mxu0 0.0
  %427 = vmatmul.mubr.f32.gmra.mrb[0].mxu0 %v360
  %v428 = vpop.f32.mrb[0].mxu0
  %v429 = vadd.f32 0.0, %v428
  %v430 = vpop.f32.mrb[0].mxu0
  %v431 = vadd.f32 0.0, %v430
  %432 = vdwg.mxu0
  %v434 = vsel %vm358, %v357, 0
  %436 = vmatprep.subr.mxu0 %v177
  %437 = vmatpush1.msra.mxu0 %v176
  %438 = vmatprep.subr.mxu0 0.0
  %439 = vmatpush1.msra.mxu0 0.0
  %440 = vmatprep.subr.mxu0 0.0
  %441 = vmatpush1.msra.mxu0 0.0
  %442 = vmatprep.subr.mxu0 0.0
  %443 = vmatpush1.msra.mxu0 0.0
  %444 = vmatprep.subr.mxu0 0.0
  %445 = vmatpush1.msra.mxu0 0.0
  %446 = vmatprep.subr.mxu0 0.0
  %447 = vmatpush1.msra.mxu0 0.0
  %448 = vmatprep.subr.mxu0 0.0
  %449 = vmatpush1.msra.mxu0 0.0
  %450 = vmatprep.subr.mxu0 0.0
  %451 = vmatpush1.msra.mxu0 0.0
  %452 = vmatprep.subr.mxu0 0.0
  %453 = vmatpush1.msra.mxu0 0.0
  %454 = vmatprep.subr.mxu0 0.0
  %455 = vmatpush1.msra.mxu0 0.0
  %456 = vmatprep.subr.mxu0 0.0
  %457 = vmatpush1.msra.mxu0 0.0
  %458 = vmatprep.subr.mxu0 0.0
  %459 = vmatpush1.msra.mxu0 0.0
  %460 = vmatprep.subr.mxu0 0.0
  %461 = vmatpush1.msra.mxu0 0.0
  %462 = vmatprep.subr.mxu0 0.0
  %463 = vmatpush1.msra.mxu0 0.0
  %464 = vmatprep.subr.mxu0 0.0
  %465 = vmatpush1.msra.mxu0 0.0
  %466 = vmatprep.subr.mxu0 0.0
  %467 = vmatpush1.msra.mxu0 0.0
  %468 = vmatprep.subr.mxu0 0.0
  %469 = vmatpush1.msra.mxu0 0.0
  %470 = vmatprep.subr.mxu0 0.0
  %471 = vmatpush1.msra.mxu0 0.0
  %472 = vmatprep.subr.mxu0 0.0
  %473 = vmatpush1.msra.mxu0 0.0
  %474 = vmatprep.subr.mxu0 0.0
  %475 = vmatpush1.msra.mxu0 0.0
  %476 = vmatprep.subr.mxu0 0.0
  %477 = vmatpush1.msra.mxu0 0.0
  %478 = vmatprep.subr.mxu0 0.0
  %479 = vmatpush1.msra.mxu0 0.0
  %480 = vmatprep.subr.mxu0 0.0
  %481 = vmatpush1.msra.mxu0 0.0
  %482 = vmatprep.subr.mxu0 0.0
  %483 = vmatpush1.msra.mxu0 0.0
  %484 = vmatprep.subr.mxu0 0.0
  %485 = vmatpush1.msra.mxu0 0.0
  %486 = vmatprep.subr.mxu0 0.0
  %487 = vmatpush1.msra.mxu0 0.0
  %488 = vmatprep.subr.mxu0 0.0
  %489 = vmatpush1.msra.mxu0 0.0
  %490 = vmatprep.subr.mxu0 0.0
  %491 = vmatpush1.msra.mxu0 0.0
  %492 = vmatprep.subr.mxu0 0.0
  %493 = vmatpush1.msra.mxu0 0.0
  %494 = vmatprep.subr.mxu0 0.0
  %495 = vmatpush1.msra.mxu0 0.0
  %496 = vmatprep.subr.mxu0 0.0
  %497 = vmatpush1.msra.mxu0 0.0
  %498 = vmatprep.subr.mxu0 0.0
  %499 = vmatpush1.msra.mxu0 0.0
  %500 = vmatprep.mubr.f32.mxu0 0.0
  %501 = vmatmul.mubr.f32.gmra.mrb[0].mxu0 %v434
  %v502 = vpop.f32.mrb[0].mxu0
  %v503 = vadd.f32 0.0, %v502
  %v504 = vpop.f32.mrb[0].mxu0
  %v505 = vadd.f32 0.0, %v504
  %506 = vdwg.mxu0
  %v507 = vlaneseq
  %v508 = vshrl.u32 %v507, 7
  %v509 = vsub.s32 0, %v508
  %v510 = vrot.slane %v429, %v509
  %v511 = vlaneseq
  %v512 = vshrl.u32 %v511, 7
  %v513 = vsub.s32 0, %v512
  %v514 = vrot.slane %v431, %v513
  %v515 = vmul.f32 %v140, %v510
  %v516 = vmul.f32 %v141, %v514
  %v517 = vlaneseq
  %v518 = vshrl.u32 %v517, 7
  %v519 = vsub.s32 0, %v518
  %v520 = vrot.slane %v503, %v519
  %v521 = vlaneseq
  %v522 = vshrl.u32 %v521, 7
  %v523 = vsub.s32 0, %v522
  %v524 = vrot.slane %v505, %v523
  %v525 = vadd.f32 %v515, %v520
  %v526 = vadd.f32 %v516, %v524
  %v527 = vpack.c.bf16 %v525, %v525
  %v528 = vpack.c.bf16 %v526, %v526
  %v529 = vld [vmem:[%s7] sm:$0xff]
  %v530 = vld [vmem:[%s7 + $0x8] sm:$0xff]
  %v531 = vld [vmem:[%s7 + $0x10] sm:$0xff]
  %v532 = vld [vmem:[%s7 + $0x18] sm:$0xff]
  %v533 = vld [vmem:[%s7 + $0x20] sm:$0xff]
  %v534 = vld [vmem:[%s7 + $0x28] sm:$0xff]
  %v535 = vld [vmem:[%s7 + $0x30] sm:$0xff]
  %v536 = vld [vmem:[%s7 + $0x38] sm:$0xff]
  %v537 = vld [vmem:[%s7 + $0x40] sm:$0xff]
  %v538 = vld [vmem:[%s7 + $0x48] sm:$0xff]
  %v539 = vld [vmem:[%s7 + $0x50] sm:$0xff]
  %v540 = vld [vmem:[%s7 + $0x58] sm:$0xff]
  %v541 = vld [vmem:[%s7 + $0x60] sm:$0xff]
  %v542 = vld [vmem:[%s7 + $0x68] sm:$0xff]
  %v543 = vld [vmem:[%s7 + $0x70] sm:$0xff]
  %v544 = vld [vmem:[%s7 + $0x78] sm:$0xff]
  %v545 = vld [vmem:[%s7 + $0x80] sm:$0xff]
  %v546 = vld [vmem:[%s7 + $0x88] sm:$0xff]
  %v547 = vld [vmem:[%s7 + $0x90] sm:$0xff]
  %v548 = vld [vmem:[%s7 + $0x98] sm:$0xff]
  %v549 = vld [vmem:[%s7 + $0xa0] sm:$0xff]
  %v550 = vld [vmem:[%s7 + $0xa8] sm:$0xff]
  %v551 = vld [vmem:[%s7 + $0xb0] sm:$0xff]
  %v552 = vld [vmem:[%s7 + $0xb8] sm:$0xff]
  %v553 = vld [vmem:[%s7 + $0xc0] sm:$0xff]
  %v554 = vld [vmem:[%s7 + $0xc8] sm:$0xff]
  %v555 = vld [vmem:[%s7 + $0xd0] sm:$0xff]
  %v556 = vld [vmem:[%s7 + $0xd8] sm:$0xff]
  %v557 = vld [vmem:[%s7 + $0xe0] sm:$0xff]
  %v558 = vld [vmem:[%s7 + $0xe8] sm:$0xff]
  %v559 = vld [vmem:[%s7 + $0xf0] sm:$0xff]
  %v560 = vld [vmem:[%s7 + $0xf8] sm:$0xff]
  %v561 = vld [vmem:[%s7 + $0x100] sm:$0xff]
  %v562 = vld [vmem:[%s7 + $0x108] sm:$0xff]
  %v563 = vld [vmem:[%s7 + $0x110] sm:$0xff]
  %v564 = vld [vmem:[%s7 + $0x118] sm:$0xff]
  %v565 = vld [vmem:[%s7 + $0x120] sm:$0xff]
  %v566 = vld [vmem:[%s7 + $0x128] sm:$0xff]
  %v567 = vld [vmem:[%s7 + $0x130] sm:$0xff]
  %v568 = vld [vmem:[%s7 + $0x138] sm:$0xff]
  %v569 = vld [vmem:[%s7 + $0x140] sm:$0xff]
  %v570 = vld [vmem:[%s7 + $0x148] sm:$0xff]
  %v571 = vld [vmem:[%s7 + $0x150] sm:$0xff]
  %v572 = vld [vmem:[%s7 + $0x158] sm:$0xff]
  %v573 = vld [vmem:[%s7 + $0x160] sm:$0xff]
  %v574 = vld [vmem:[%s7 + $0x168] sm:$0xff]
  %v575 = vld [vmem:[%s7 + $0x170] sm:$0xff]
  %v576 = vld [vmem:[%s7 + $0x178] sm:$0xff]
  %v577 = vld [vmem:[%s7 + $0x180] sm:$0xff]
  %v578 = vld [vmem:[%s7 + $0x188] sm:$0xff]
  %v579 = vld [vmem:[%s7 + $0x190] sm:$0xff]
  %v580 = vld [vmem:[%s7 + $0x198] sm:$0xff]
  %v581 = vld [vmem:[%s7 + $0x1a0] sm:$0xff]
  %v582 = vld [vmem:[%s7 + $0x1a8] sm:$0xff]
  %v583 = vld [vmem:[%s7 + $0x1b0] sm:$0xff]
  %v584 = vld [vmem:[%s7 + $0x1b8] sm:$0xff]
  %v585 = vld [vmem:[%s7 + $0x1c0] sm:$0xff]
  %v586 = vld [vmem:[%s7 + $0x1c8] sm:$0xff]
  %v587 = vld [vmem:[%s7 + $0x1d0] sm:$0xff]
  %v588 = vld [vmem:[%s7 + $0x1d8] sm:$0xff]
  %v589 = vld [vmem:[%s7 + $0x1e0] sm:$0xff]
  %v590 = vld [vmem:[%s7 + $0x1e8] sm:$0xff]
  %v591 = vld [vmem:[%s7 + $0x1f0] sm:$0xff]
  %v592 = vld [vmem:[%s7 + $0x1f8] sm:$0xff]
  %v593 = vld [vmem:[%s7 + $0x200] sm:$0xff]
  %v594 = vld [vmem:[%s7 + $0x208] sm:$0xff]
  %v595 = vld [vmem:[%s7 + $0x210] sm:$0xff]
  %v596 = vld [vmem:[%s7 + $0x218] sm:$0xff]
  %v597 = vld [vmem:[%s7 + $0x220] sm:$0xff]
  %v598 = vld [vmem:[%s7 + $0x228] sm:$0xff]
  %v599 = vld [vmem:[%s7 + $0x230] sm:$0xff]
  %v600 = vld [vmem:[%s7 + $0x238] sm:$0xff]
  %v601 = vld [vmem:[%s7 + $0x240] sm:$0xff]
  %v602 = vld [vmem:[%s7 + $0x248] sm:$0xff]
  %v603 = vld [vmem:[%s7 + $0x250] sm:$0xff]
  %v604 = vld [vmem:[%s7 + $0x258] sm:$0xff]
  %v605 = vld [vmem:[%s7 + $0x260] sm:$0xff]
  %v606 = vld [vmem:[%s7 + $0x268] sm:$0xff]
  %v607 = vld [vmem:[%s7 + $0x270] sm:$0xff]
  %v608 = vld [vmem:[%s7 + $0x278] sm:$0xff]
  %v609 = vld [vmem:[%s7 + $0x280] sm:$0xff]
  %v610 = vld [vmem:[%s7 + $0x288] sm:$0xff]
  %v611 = vld [vmem:[%s7 + $0x290] sm:$0xff]
  %v612 = vld [vmem:[%s7 + $0x298] sm:$0xff]
  %v613 = vld [vmem:[%s7 + $0x2a0] sm:$0xff]
  %v614 = vld [vmem:[%s7 + $0x2a8] sm:$0xff]
  %v615 = vld [vmem:[%s7 + $0x2b0] sm:$0xff]
  %v616 = vld [vmem:[%s7 + $0x2b8] sm:$0xff]
  %v617 = vld [vmem:[%s7 + $0x2c0] sm:$0xff]
  %v618 = vld [vmem:[%s7 + $0x2c8] sm:$0xff]
  %v619 = vld [vmem:[%s7 + $0x2d0] sm:$0xff]
  %v620 = vld [vmem:[%s7 + $0x2d8] sm:$0xff]
  %v621 = vld [vmem:[%s7 + $0x2e0] sm:$0xff]
  %v622 = vld [vmem:[%s7 + $0x2e8] sm:$0xff]
  %v623 = vld [vmem:[%s7 + $0x2f0] sm:$0xff]
  %v624 = vld [vmem:[%s7 + $0x2f8] sm:$0xff]
  %v625 = vld [vmem:[%s8] sm:$0x3f]
  %v627 = vlaneseq
  %v628 = vshrl.u32 %v627, 7
  %v629 = vsub.s32 0, %v628
  %v630 = vrot.slane %v625, %v629
  %v631 = vlaneseq
  %v632 = vshrl.u32 %v631, 7
  %v633 = vsub.s32 1, %v632
  %v634 = vrot.slane %v625, %v633
  %v635 = vlaneseq
  %v636 = vshrl.u32 %v635, 7
  %v637 = vsub.s32 2, %v636
  %v638 = vrot.slane %v625, %v637
  %v639 = vlaneseq
  %v640 = vshrl.u32 %v639, 7
  %v641 = vsub.s32 3, %v640
  %v642 = vrot.slane %v625, %v641
  %v643 = vlaneseq
  %v644 = vshrl.u32 %v643, 7
  %v645 = vsub.s32 4, %v644
  %v646 = vrot.slane %v625, %v645
  %v647 = vlaneseq
  %v648 = vshrl.u32 %v647, 7
  %v649 = vsub.s32 5, %v648
  %v650 = vrot.slane %v625, %v649
  %v753 = vunpack.c.l.b16 %v529
  %v754 = vunpack.c.h.b16 %v529
  %v755 = vunpack.c.l.b16 %v530
  %v756 = vunpack.c.h.b16 %v530
  %v757 = vunpack.c.l.b16 %v531
  %v758 = vunpack.c.h.b16 %v531
  %v759 = vunpack.c.l.b16 %v532
  %v760 = vunpack.c.h.b16 %v532
  %v761 = vunpack.c.l.b16 %v533
  %v762 = vunpack.c.h.b16 %v533
  %v763 = vunpack.c.l.b16 %v534
  %v764 = vunpack.c.h.b16 %v534
  %v765 = vunpack.c.l.b16 %v535
  %v766 = vunpack.c.h.b16 %v535
  %v767 = vunpack.c.l.b16 %v536
  %v768 = vunpack.c.h.b16 %v536
  %v769 = vunpack.c.l.b16 %v537
  %v770 = vunpack.c.h.b16 %v537
  %v771 = vunpack.c.l.b16 %v538
  %v772 = vunpack.c.h.b16 %v538
  %v773 = vunpack.c.l.b16 %v539
  %v774 = vunpack.c.h.b16 %v539
  %v775 = vunpack.c.l.b16 %v540
  %v776 = vunpack.c.h.b16 %v540
  %v777 = vunpack.c.l.b16 %v541
  %v778 = vunpack.c.h.b16 %v541
  %v779 = vunpack.c.l.b16 %v542
  %v780 = vunpack.c.h.b16 %v542
  %v781 = vunpack.c.l.b16 %v543
  %v782 = vunpack.c.h.b16 %v543
  %v783 = vunpack.c.l.b16 %v544
  %v784 = vunpack.c.h.b16 %v544
  %v785 = vunpack.c.l.b16 %v545
  %v786 = vunpack.c.h.b16 %v545
  %v787 = vunpack.c.l.b16 %v546
  %v788 = vunpack.c.h.b16 %v546
  %v789 = vunpack.c.l.b16 %v547
  %v790 = vunpack.c.h.b16 %v547
  %v791 = vunpack.c.l.b16 %v548
  %v792 = vunpack.c.h.b16 %v548
  %v793 = vunpack.c.l.b16 %v549
  %v794 = vunpack.c.h.b16 %v549
  %v795 = vunpack.c.l.b16 %v550
  %v796 = vunpack.c.h.b16 %v550
  %v797 = vunpack.c.l.b16 %v551
  %v798 = vunpack.c.h.b16 %v551
  %v799 = vunpack.c.l.b16 %v552
  %v800 = vunpack.c.h.b16 %v552
  %v801 = vunpack.c.l.b16 %v553
  %v802 = vunpack.c.h.b16 %v553
  %v803 = vunpack.c.l.b16 %v554
  %v804 = vunpack.c.h.b16 %v554
  %v805 = vunpack.c.l.b16 %v555
  %v806 = vunpack.c.h.b16 %v555
  %v807 = vunpack.c.l.b16 %v556
  %v808 = vunpack.c.h.b16 %v556
  %v809 = vunpack.c.l.b16 %v557
  %v810 = vunpack.c.h.b16 %v557
  %v811 = vunpack.c.l.b16 %v558
  %v812 = vunpack.c.h.b16 %v558
  %v813 = vunpack.c.l.b16 %v559
  %v814 = vunpack.c.h.b16 %v559
  %v815 = vunpack.c.l.b16 %v560
  %v816 = vunpack.c.h.b16 %v560
  %v817 = vunpack.c.l.b16 %v561
  %v818 = vunpack.c.h.b16 %v561
  %v819 = vunpack.c.l.b16 %v562
  %v820 = vunpack.c.h.b16 %v562
  %v821 = vunpack.c.l.b16 %v563
  %v822 = vunpack.c.h.b16 %v563
  %v823 = vunpack.c.l.b16 %v564
  %v824 = vunpack.c.h.b16 %v564
  %v825 = vunpack.c.l.b16 %v565
  %v826 = vunpack.c.h.b16 %v565
  %v827 = vunpack.c.l.b16 %v566
  %v828 = vunpack.c.h.b16 %v566
  %v829 = vunpack.c.l.b16 %v567
  %v830 = vunpack.c.h.b16 %v567
  %v831 = vunpack.c.l.b16 %v568
  %v832 = vunpack.c.h.b16 %v568
  %v833 = vunpack.c.l.b16 %v569
  %v834 = vunpack.c.h.b16 %v569
  %v835 = vunpack.c.l.b16 %v570
  %v836 = vunpack.c.h.b16 %v570
  %v837 = vunpack.c.l.b16 %v571
  %v838 = vunpack.c.h.b16 %v571
  %v839 = vunpack.c.l.b16 %v572
  %v840 = vunpack.c.h.b16 %v572
  %v841 = vunpack.c.l.b16 %v573
  %v842 = vunpack.c.h.b16 %v573
  %v843 = vunpack.c.l.b16 %v574
  %v844 = vunpack.c.h.b16 %v574
  %v845 = vunpack.c.l.b16 %v575
  %v846 = vunpack.c.h.b16 %v575
  %v847 = vunpack.c.l.b16 %v576
  %v848 = vunpack.c.h.b16 %v576
  %v849 = vunpack.c.l.b16 %v577
  %v850 = vunpack.c.h.b16 %v577
  %v851 = vunpack.c.l.b16 %v578
  %v852 = vunpack.c.h.b16 %v578
  %v853 = vunpack.c.l.b16 %v579
  %v854 = vunpack.c.h.b16 %v579
  %v855 = vunpack.c.l.b16 %v580
  %v856 = vunpack.c.h.b16 %v580
  %v857 = vunpack.c.l.b16 %v581
  %v858 = vunpack.c.h.b16 %v581
  %v859 = vunpack.c.l.b16 %v582
  %v860 = vunpack.c.h.b16 %v582
  %v861 = vunpack.c.l.b16 %v583
  %v862 = vunpack.c.h.b16 %v583
  %v863 = vunpack.c.l.b16 %v584
  %v864 = vunpack.c.h.b16 %v584
  %v865 = vunpack.c.l.b16 %v585
  %v866 = vunpack.c.h.b16 %v585
  %v867 = vunpack.c.l.b16 %v586
  %v868 = vunpack.c.h.b16 %v586
  %v869 = vunpack.c.l.b16 %v587
  %v870 = vunpack.c.h.b16 %v587
  %v871 = vunpack.c.l.b16 %v588
  %v872 = vunpack.c.h.b16 %v588
  %v873 = vunpack.c.l.b16 %v589
  %v874 = vunpack.c.h.b16 %v589
  %v875 = vunpack.c.l.b16 %v590
  %v876 = vunpack.c.h.b16 %v590
  %v877 = vunpack.c.l.b16 %v591
  %v878 = vunpack.c.h.b16 %v591
  %v879 = vunpack.c.l.b16 %v592
  %v880 = vunpack.c.h.b16 %v592
  %v881 = vunpack.c.l.b16 %v593
  %v882 = vunpack.c.h.b16 %v593
  %v883 = vunpack.c.l.b16 %v594
  %v884 = vunpack.c.h.b16 %v594
  %v885 = vunpack.c.l.b16 %v595
  %v886 = vunpack.c.h.b16 %v595
  %v887 = vunpack.c.l.b16 %v596
  %v888 = vunpack.c.h.b16 %v596
  %v889 = vunpack.c.l.b16 %v597
  %v890 = vunpack.c.h.b16 %v597
  %v891 = vunpack.c.l.b16 %v598
  %v892 = vunpack.c.h.b16 %v598
  %v893 = vunpack.c.l.b16 %v599
  %v894 = vunpack.c.h.b16 %v599
  %v895 = vunpack.c.l.b16 %v600
  %v896 = vunpack.c.h.b16 %v600
  %v897 = vunpack.c.l.b16 %v601
  %v898 = vunpack.c.h.b16 %v601
  %v899 = vunpack.c.l.b16 %v602
  %v900 = vunpack.c.h.b16 %v602
  %v901 = vunpack.c.l.b16 %v603
  %v902 = vunpack.c.h.b16 %v603
  %v903 = vunpack.c.l.b16 %v604
  %v904 = vunpack.c.h.b16 %v604
  %v905 = vunpack.c.l.b16 %v605
  %v906 = vunpack.c.h.b16 %v605
  %v907 = vunpack.c.l.b16 %v606
  %v908 = vunpack.c.h.b16 %v606
  %v909 = vunpack.c.l.b16 %v607
  %v910 = vunpack.c.h.b16 %v607
  %v911 = vunpack.c.l.b16 %v608
  %v912 = vunpack.c.h.b16 %v608
  %v913 = vunpack.c.l.b16 %v609
  %v914 = vunpack.c.h.b16 %v609
  %v915 = vunpack.c.l.b16 %v610
  %v916 = vunpack.c.h.b16 %v610
  %v917 = vunpack.c.l.b16 %v611
  %v918 = vunpack.c.h.b16 %v611
  %v919 = vunpack.c.l.b16 %v612
  %v920 = vunpack.c.h.b16 %v612
  %v921 = vunpack.c.l.b16 %v613
  %v922 = vunpack.c.h.b16 %v613
  %v923 = vunpack.c.l.b16 %v614
  %v924 = vunpack.c.h.b16 %v614
  %v925 = vunpack.c.l.b16 %v615
  %v926 = vunpack.c.h.b16 %v615
  %v927 = vunpack.c.l.b16 %v616
  %v928 = vunpack.c.h.b16 %v616
  %v929 = vunpack.c.l.b16 %v617
  %v930 = vunpack.c.h.b16 %v617
  %v931 = vunpack.c.l.b16 %v618
  %v932 = vunpack.c.h.b16 %v618
  %v933 = vunpack.c.l.b16 %v619
  %v934 = vunpack.c.h.b16 %v619
  %v935 = vunpack.c.l.b16 %v620
  %v936 = vunpack.c.h.b16 %v620
  %v937 = vunpack.c.l.b16 %v621
  %v938 = vunpack.c.h.b16 %v621
  %v939 = vunpack.c.l.b16 %v622
  %v940 = vunpack.c.h.b16 %v622
  %v941 = vunpack.c.l.b16 %v623
  %v942 = vunpack.c.h.b16 %v623
  %v943 = vunpack.c.l.b16 %v624
  %v944 = vunpack.c.h.b16 %v624
  %v945 = vpack.c.b16 %v759, %v753
  %v946 = vpack.c.b16 %v760, %v754
  %v947 = vpack.c.b16 %v761, %v755
  %v948 = vpack.c.b16 %v762, %v756
  %v949 = vpack.c.b16 %v763, %v757
  %v950 = vpack.c.b16 %v764, %v758
  %v951 = vpack.c.b16 %v771, %v765
  %v952 = vpack.c.b16 %v772, %v766
  %v953 = vpack.c.b16 %v773, %v767
  %v954 = vpack.c.b16 %v774, %v768
  %v955 = vpack.c.b16 %v775, %v769
  %v956 = vpack.c.b16 %v776, %v770
  %v957 = vpack.c.b16 %v783, %v777
  %v958 = vpack.c.b16 %v784, %v778
  %v959 = vpack.c.b16 %v785, %v779
  %v960 = vpack.c.b16 %v786, %v780
  %v961 = vpack.c.b16 %v787, %v781
  %v962 = vpack.c.b16 %v788, %v782
  %v963 = vpack.c.b16 %v795, %v789
  %v964 = vpack.c.b16 %v796, %v790
  %v965 = vpack.c.b16 %v797, %v791
  %v966 = vpack.c.b16 %v798, %v792
  %v967 = vpack.c.b16 %v799, %v793
  %v968 = vpack.c.b16 %v800, %v794
  %v969 = vpack.c.b16 %v807, %v801
  %v970 = vpack.c.b16 %v808, %v802
  %v971 = vpack.c.b16 %v809, %v803
  %v972 = vpack.c.b16 %v810, %v804
  %v973 = vpack.c.b16 %v811, %v805
  %v974 = vpack.c.b16 %v812, %v806
  %v975 = vpack.c.b16 %v819, %v813
  %v976 = vpack.c.b16 %v820, %v814
  %v977 = vpack.c.b16 %v821, %v815
  %v978 = vpack.c.b16 %v822, %v816
  %v979 = vpack.c.b16 %v823, %v817
  %v980 = vpack.c.b16 %v824, %v818
  %v981 = vpack.c.b16 %v831, %v825
  %v982 = vpack.c.b16 %v832, %v826
  %v983 = vpack.c.b16 %v833, %v827
  %v984 = vpack.c.b16 %v834, %v828
  %v985 = vpack.c.b16 %v835, %v829
  %v986 = vpack.c.b16 %v836, %v830
  %v987 = vpack.c.b16 %v843, %v837
  %v988 = vpack.c.b16 %v844, %v838
  %v989 = vpack.c.b16 %v845, %v839
  %v990 = vpack.c.b16 %v846, %v840
  %v991 = vpack.c.b16 %v847, %v841
  %v992 = vpack.c.b16 %v848, %v842
  %v993 = vpack.c.b16 %v855, %v849
  %v994 = vpack.c.b16 %v856, %v850
  %v995 = vpack.c.b16 %v857, %v851
  %v996 = vpack.c.b16 %v858, %v852
  %v997 = vpack.c.b16 %v859, %v853
  %v998 = vpack.c.b16 %v860, %v854
  %v999 = vpack.c.b16 %v867, %v861
  %v1000 = vpack.c.b16 %v868, %v862
  %v1001 = vpack.c.b16 %v869, %v863
  %v1002 = vpack.c.b16 %v870, %v864
  %v1003 = vpack.c.b16 %v871, %v865
  %v1004 = vpack.c.b16 %v872, %v866
  %v1005 = vpack.c.b16 %v879, %v873
  %v1006 = vpack.c.b16 %v880, %v874
  %v1007 = vpack.c.b16 %v881, %v875
  %v1008 = vpack.c.b16 %v882, %v876
  %v1009 = vpack.c.b16 %v883, %v877
  %v1010 = vpack.c.b16 %v884, %v878
  %v1011 = vpack.c.b16 %v891, %v885
  %v1012 = vpack.c.b16 %v892, %v886
  %v1013 = vpack.c.b16 %v893, %v887
  %v1014 = vpack.c.b16 %v894, %v888
  %v1015 = vpack.c.b16 %v895, %v889
  %v1016 = vpack.c.b16 %v896, %v890
  %v1017 = vpack.c.b16 %v903, %v897
  %v1018 = vpack.c.b16 %v904, %v898
  %v1019 = vpack.c.b16 %v905, %v899
  %v1020 = vpack.c.b16 %v906, %v900
  %v1021 = vpack.c.b16 %v907, %v901
  %v1022 = vpack.c.b16 %v908, %v902
  %v1023 = vpack.c.b16 %v915, %v909
  %v1024 = vpack.c.b16 %v916, %v910
  %v1025 = vpack.c.b16 %v917, %v911
  %v1026 = vpack.c.b16 %v918, %v912
  %v1027 = vpack.c.b16 %v919, %v913
  %v1028 = vpack.c.b16 %v920, %v914
  %v1029 = vpack.c.b16 %v927, %v921
  %v1030 = vpack.c.b16 %v928, %v922
  %v1031 = vpack.c.b16 %v929, %v923
  %v1032 = vpack.c.b16 %v930, %v924
  %v1033 = vpack.c.b16 %v931, %v925
  %v1034 = vpack.c.b16 %v932, %v926
  %v1035 = vpack.c.b16 %v939, %v933
  %v1036 = vpack.c.b16 %v940, %v934
  %v1037 = vpack.c.b16 %v941, %v935
  %v1038 = vpack.c.b16 %v942, %v936
  %v1039 = vpack.c.b16 %v943, %v937
  %v1040 = vpack.c.b16 %v944, %v938
  %1137 = vmatprep.subr.bf16.mxu0 %v946
  %1138 = vmatpush1.bf16.msra.mxu0 %v945
  %1139 = vmatprep.subr.bf16.mxu0 %v952
  %1140 = vmatpush1.bf16.msra.mxu0 %v951
  %1141 = vmatprep.subr.bf16.mxu0 %v958
  %1142 = vmatpush1.bf16.msra.mxu0 %v957
  %1143 = vmatprep.subr.bf16.mxu0 %v964
  %1144 = vmatpush1.bf16.msra.mxu0 %v963
  %1145 = vmatprep.subr.bf16.mxu0 %v970
  %1146 = vmatpush1.bf16.msra.mxu0 %v969
  %1147 = vmatprep.subr.bf16.mxu0 %v976
  %1148 = vmatpush1.bf16.msra.mxu0 %v975
  %1149 = vmatprep.subr.bf16.mxu0 %v982
  %1150 = vmatpush1.bf16.msra.mxu0 %v981
  %1151 = vmatprep.subr.bf16.mxu0 %v988
  %1152 = vmatpush1.bf16.msra.mxu0 %v987
  %1153 = vmatprep.subr.bf16.mxu0 %v994
  %1154 = vmatpush1.bf16.msra.mxu0 %v993
  %1155 = vmatprep.subr.bf16.mxu0 %v1000
  %1156 = vmatpush1.bf16.msra.mxu0 %v999
  %1157 = vmatprep.subr.bf16.mxu0 %v1006
  %1158 = vmatpush1.bf16.msra.mxu0 %v1005
  %1159 = vmatprep.subr.bf16.mxu0 %v1012
  %1160 = vmatpush1.bf16.msra.mxu0 %v1011
  %1161 = vmatprep.subr.bf16.mxu0 %v1018
  %1162 = vmatpush1.bf16.msra.mxu0 %v1017
  %1163 = vmatprep.subr.bf16.mxu0 %v1024
  %1164 = vmatpush1.bf16.msra.mxu0 %v1023
  %1165 = vmatprep.subr.bf16.mxu0 %v1030
  %1166 = vmatpush1.bf16.msra.mxu0 %v1029
  %1167 = vmatprep.subr.bf16.mxu0 %v1036
  %1168 = vmatpush1.bf16.msra.mxu0 %v1035
  %1169 = vmatprep.mubr.bf16.mxu0 %v528
  %1170 = vmatmul.mubr.bf16.gmra.mrb[0].mxu0 %v527
  %v1171 = vpop.f32.mrb[0].mxu0
  %v1172 = vadd.f32 %v630, %v1171
  %v1173 = vpop.f32.mrb[0].mxu0
  %v1174 = vadd.f32 %v634, %v1173
  %v1175 = vpop.f32.mrb[0].mxu0
  %v1176 = vpop.f32.mrb[0].mxu0
  %1177 = vdwg.mxu0
  %1178 = vmatprep.subr.bf16.mxu0 %v948
  %1179 = vmatpush1.bf16.msra.mxu0 %v947
  %1180 = vmatprep.subr.bf16.mxu0 %v954
  %1181 = vmatpush1.bf16.msra.mxu0 %v953
  %1182 = vmatprep.subr.bf16.mxu0 %v960
  %1183 = vmatpush1.bf16.msra.mxu0 %v959
  %1184 = vmatprep.subr.bf16.mxu0 %v966
  %1185 = vmatpush1.bf16.msra.mxu0 %v965
  %1186 = vmatprep.subr.bf16.mxu0 %v972
  %1187 = vmatpush1.bf16.msra.mxu0 %v971
  %1188 = vmatprep.subr.bf16.mxu0 %v978
  %1189 = vmatpush1.bf16.msra.mxu0 %v977
  %1190 = vmatprep.subr.bf16.mxu0 %v984
  %1191 = vmatpush1.bf16.msra.mxu0 %v983
  %1192 = vmatprep.subr.bf16.mxu0 %v990
  %1193 = vmatpush1.bf16.msra.mxu0 %v989
  %1194 = vmatprep.subr.bf16.mxu0 %v996
  %1195 = vmatpush1.bf16.msra.mxu0 %v995
  %1196 = vmatprep.subr.bf16.mxu0 %v1002
  %1197 = vmatpush1.bf16.msra.mxu0 %v1001
  %1198 = vmatprep.subr.bf16.mxu0 %v1008
  %1199 = vmatpush1.bf16.msra.mxu0 %v1007
  %1200 = vmatprep.subr.bf16.mxu0 %v1014
  %1201 = vmatpush1.bf16.msra.mxu0 %v1013
  %1202 = vmatprep.subr.bf16.mxu0 %v1020
  %1203 = vmatpush1.bf16.msra.mxu0 %v1019
  %1204 = vmatprep.subr.bf16.mxu0 %v1026
  %1205 = vmatpush1.bf16.msra.mxu0 %v1025
  %1206 = vmatprep.subr.bf16.mxu0 %v1032
  %1207 = vmatpush1.bf16.msra.mxu0 %v1031
  %1208 = vmatprep.subr.bf16.mxu0 %v1038
  %1209 = vmatpush1.bf16.msra.mxu0 %v1037
  %1210 = vmatprep.mubr.bf16.mxu0 %v528
  %1211 = vmatmul.mubr.bf16.gmra.mrb[0].mxu0 %v527
  %v1212 = vpop.f32.mrb[0].mxu0
  %v1213 = vadd.f32 %v638, %v1212
  %v1214 = vpop.f32.mrb[0].mxu0
  %v1215 = vadd.f32 %v642, %v1214
  %v1216 = vpop.f32.mrb[0].mxu0
  %v1217 = vpop.f32.mrb[0].mxu0
  %1218 = vdwg.mxu0
  %1219 = vmatprep.subr.bf16.mxu0 %v950
  %1220 = vmatpush1.bf16.msra.mxu0 %v949
  %1221 = vmatprep.subr.bf16.mxu0 %v956
  %1222 = vmatpush1.bf16.msra.mxu0 %v955
  %1223 = vmatprep.subr.bf16.mxu0 %v962
  %1224 = vmatpush1.bf16.msra.mxu0 %v961
  %1225 = vmatprep.subr.bf16.mxu0 %v968
  %1226 = vmatpush1.bf16.msra.mxu0 %v967
  %1227 = vmatprep.subr.bf16.mxu0 %v974
  %1228 = vmatpush1.bf16.msra.mxu0 %v973
  %1229 = vmatprep.subr.bf16.mxu0 %v980
  %1230 = vmatpush1.bf16.msra.mxu0 %v979
  %1231 = vmatprep.subr.bf16.mxu0 %v986
  %1232 = vmatpush1.bf16.msra.mxu0 %v985
  %1233 = vmatprep.subr.bf16.mxu0 %v992
  %1234 = vmatpush1.bf16.msra.mxu0 %v991
  %1235 = vmatprep.subr.bf16.mxu0 %v998
  %1236 = vmatpush1.bf16.msra.mxu0 %v997
  %1237 = vmatprep.subr.bf16.mxu0 %v1004
  %1238 = vmatpush1.bf16.msra.mxu0 %v1003
  %1239 = vmatprep.subr.bf16.mxu0 %v1010
  %1240 = vmatpush1.bf16.msra.mxu0 %v1009
  %1241 = vmatprep.subr.bf16.mxu0 %v1016
  %1242 = vmatpush1.bf16.msra.mxu0 %v1015
  %1243 = vmatprep.subr.bf16.mxu0 %v1022
  %1244 = vmatpush1.bf16.msra.mxu0 %v1021
  %1245 = vmatprep.subr.bf16.mxu0 %v1028
  %1246 = vmatpush1.bf16.msra.mxu0 %v1027
  %1247 = vmatprep.subr.bf16.mxu0 %v1034
  %1248 = vmatpush1.bf16.msra.mxu0 %v1033
  %1249 = vmatprep.subr.bf16.mxu0 %v1040
  %1250 = vmatpush1.bf16.msra.mxu0 %v1039
  %1251 = vmatprep.mubr.bf16.mxu0 %v528
  %1252 = vmatmul.mubr.bf16.gmra.mrb[0].mxu0 %v527
  %v1253 = vpop.f32.mrb[0].mxu0
  %v1254 = vadd.f32 %v646, %v1253
  %v1255 = vpop.f32.mrb[0].mxu0
  %v1256 = vadd.f32 %v650, %v1255
  %v1257 = vpop.f32.mrb[0].mxu0
  %v1258 = vpop.f32.mrb[0].mxu0
  %1259 = vdwg.mxu0
  %vm1260 = vcmp.ge.f32.partialorder %v1172, 0.0
  %vm1261 = vcmp.ge.f32.partialorder %v1174, 0.0
  %vm1262 = vcmp.ge.f32.partialorder %v1213, 0.0
  %vm1263 = vcmp.ge.f32.partialorder %v1215, 0.0
  %vm1264 = vcmp.ge.f32.partialorder %v1254, 0.0
  %vm1265 = vcmp.ge.f32.partialorder %v1256, 0.0
  %v1266 = vmul.f32 %v1172, 0.01
  %v1267 = vmul.f32 %v1174, 0.01
  %v1268 = vmul.f32 %v1213, 0.01
  %v1269 = vmul.f32 %v1215, 0.01
  %v1270 = vmul.f32 %v1254, 0.01
  %v1271 = vmul.f32 %v1256, 0.01
  %v1272 = vsel %vm1260, %v1172, %v1266
  %v1273 = vsel %vm1261, %v1174, %v1267
  %v1274 = vsel %vm1262, %v1213, %v1268
  %v1275 = vsel %vm1263, %v1215, %v1269
  %v1276 = vsel %vm1264, %v1254, %v1270
  %v1277 = vsel %vm1265, %v1256, %v1271
  %v1278 = vld [vmem:[%s9] sm:$0x1]
  %v1279 = vld [vmem:[%s10] sm:$0x1]
  %v1280 = vld [vmem:[%s11] sm:$0xff]
  %v1281 = vld [vmem:[%s11 + $0x8] sm:$0xff]
  %v1282 = vld [vmem:[%s11 + $0x10] sm:$0xff]
  %v1283 = vld [vmem:[%s11 + $0x18] sm:$0xff]
  %v1284 = vld [vmem:[%s11 + $0x20] sm:$0xff]
  %v1285 = vld [vmem:[%s11 + $0x28] sm:$0xff]
  %v1286 = vld [vmem:[%s11 + $0x30] sm:$0xff]
  %v1287 = vld [vmem:[%s11 + $0x38] sm:$0xff]
  %v1288 = vld [vmem:[%s11 + $0x40] sm:$0xff]
  %v1289 = vld [vmem:[%s11 + $0x48] sm:$0xff]
  %v1290 = vld [vmem:[%s11 + $0x50] sm:$0xff]
  %v1291 = vld [vmem:[%s11 + $0x58] sm:$0xff]
  %v1292 = vld [vmem:[%s11 + $0x60] sm:$0xff]
  %v1293 = vld [vmem:[%s11 + $0x68] sm:$0xff]
  %v1294 = vld [vmem:[%s11 + $0x70] sm:$0xff]
  %v1295 = vld [vmem:[%s11 + $0x78] sm:$0xff]
  %v1296 = vld [vmem:[%s11 + $0x80] sm:$0xff]
  %v1297 = vld [vmem:[%s11 + $0x88] sm:$0xff]
  %v1298 = vld [vmem:[%s11 + $0x90] sm:$0xff]
  %v1299 = vld [vmem:[%s11 + $0x98] sm:$0xff]
  %v1300 = vld [vmem:[%s11 + $0xa0] sm:$0xff]
  %v1301 = vld [vmem:[%s11 + $0xa8] sm:$0xff]
  %v1302 = vld [vmem:[%s11 + $0xb0] sm:$0xff]
  %v1303 = vld [vmem:[%s11 + $0xb8] sm:$0xff]
  %v1304 = vld [vmem:[%s11 + $0xc0] sm:$0xff]
  %v1305 = vld [vmem:[%s11 + $0xc8] sm:$0xff]
  %v1306 = vld [vmem:[%s11 + $0xd0] sm:$0xff]
  %v1307 = vld [vmem:[%s11 + $0xd8] sm:$0xff]
  %v1308 = vld [vmem:[%s11 + $0xe0] sm:$0xff]
  %v1309 = vld [vmem:[%s11 + $0xe8] sm:$0xff]
  %v1310 = vld [vmem:[%s11 + $0xf0] sm:$0xff]
  %v1311 = vld [vmem:[%s11 + $0xf8] sm:$0xff]
  %v1312 = vld [vmem:[%s11 + $0x100] sm:$0xff]
  %v1313 = vld [vmem:[%s11 + $0x108] sm:$0xff]
  %v1314 = vld [vmem:[%s11 + $0x110] sm:$0xff]
  %v1315 = vld [vmem:[%s11 + $0x118] sm:$0xff]
  %v1316 = vld [vmem:[%s11 + $0x120] sm:$0xff]
  %v1317 = vld [vmem:[%s11 + $0x128] sm:$0xff]
  %v1318 = vld [vmem:[%s11 + $0x130] sm:$0xff]
  %v1319 = vld [vmem:[%s11 + $0x138] sm:$0xff]
  %v1320 = vld [vmem:[%s11 + $0x140] sm:$0xff]
  %v1321 = vld [vmem:[%s11 + $0x148] sm:$0xff]
  %v1322 = vld [vmem:[%s11 + $0x150] sm:$0xff]
  %v1323 = vld [vmem:[%s11 + $0x158] sm:$0xff]
  %v1324 = vld [vmem:[%s11 + $0x160] sm:$0xff]
  %v1325 = vld [vmem:[%s11 + $0x168] sm:$0xff]
  %v1326 = vld [vmem:[%s11 + $0x170] sm:$0xff]
  %v1327 = vld [vmem:[%s11 + $0x178] sm:$0xff]
  %v1328 = vld [vmem:[%s11 + $0x180] sm:$0xff]
  %v1329 = vld [vmem:[%s11 + $0x188] sm:$0xff]
  %v1330 = vld [vmem:[%s11 + $0x190] sm:$0xff]
  %v1331 = vld [vmem:[%s11 + $0x198] sm:$0xff]
  %v1332 = vld [vmem:[%s11 + $0x1a0] sm:$0xff]
  %v1333 = vld [vmem:[%s11 + $0x1a8] sm:$0xff]
  %v1334 = vld [vmem:[%s11 + $0x1b0] sm:$0xff]
  %v1335 = vld [vmem:[%s11 + $0x1b8] sm:$0xff]
  %v1336 = vld [vmem:[%s11 + $0x1c0] sm:$0xff]
  %v1337 = vld [vmem:[%s11 + $0x1c8] sm:$0xff]
  %v1338 = vld [vmem:[%s11 + $0x1d0] sm:$0xff]
  %v1339 = vld [vmem:[%s11 + $0x1d8] sm:$0xff]
  %v1340 = vld [vmem:[%s11 + $0x1e0] sm:$0xff]
  %v1341 = vld [vmem:[%s11 + $0x1e8] sm:$0xff]
  %v1342 = vld [vmem:[%s11 + $0x1f0] sm:$0xff]
  %v1343 = vld [vmem:[%s11 + $0x1f8] sm:$0xff]
  %v1344 = vld [vmem:[%s11 + $0x200] sm:$0xff]
  %v1345 = vld [vmem:[%s11 + $0x208] sm:$0xff]
  %v1346 = vld [vmem:[%s11 + $0x210] sm:$0xff]
  %v1347 = vld [vmem:[%s11 + $0x218] sm:$0xff]
  %v1348 = vld [vmem:[%s11 + $0x220] sm:$0xff]
  %v1349 = vld [vmem:[%s11 + $0x228] sm:$0xff]
  %v1350 = vld [vmem:[%s11 + $0x230] sm:$0xff]
  %v1351 = vld [vmem:[%s11 + $0x238] sm:$0xff]
  %v1352 = vld [vmem:[%s11 + $0x240] sm:$0xff]
  %v1353 = vld [vmem:[%s11 + $0x248] sm:$0xff]
  %v1354 = vld [vmem:[%s11 + $0x250] sm:$0xff]
  %v1355 = vld [vmem:[%s11 + $0x258] sm:$0xff]
  %v1356 = vld [vmem:[%s11 + $0x260] sm:$0xff]
  %v1357 = vld [vmem:[%s11 + $0x268] sm:$0xff]
  %v1358 = vld [vmem:[%s11 + $0x270] sm:$0xff]
  %v1359 = vld [vmem:[%s11 + $0x278] sm:$0xff]
  %v1360 = vld [vmem:[%s11 + $0x280] sm:$0xff]
  %v1361 = vld [vmem:[%s11 + $0x288] sm:$0xff]
  %v1362 = vld [vmem:[%s11 + $0x290] sm:$0xff]
  %v1363 = vld [vmem:[%s11 + $0x298] sm:$0xff]
  %v1364 = vld [vmem:[%s11 + $0x2a0] sm:$0xff]
  %v1365 = vld [vmem:[%s11 + $0x2a8] sm:$0xff]
  %v1366 = vld [vmem:[%s11 + $0x2b0] sm:$0xff]
  %v1367 = vld [vmem:[%s11 + $0x2b8] sm:$0xff]
  %v1368 = vld [vmem:[%s11 + $0x2c0] sm:$0xff]
  %v1369 = vld [vmem:[%s11 + $0x2c8] sm:$0xff]
  %v1370 = vld [vmem:[%s11 + $0x2d0] sm:$0xff]
  %v1371 = vld [vmem:[%s11 + $0x2d8] sm:$0xff]
  %v1372 = vld [vmem:[%s11 + $0x2e0] sm:$0xff]
  %v1373 = vld [vmem:[%s11 + $0x2e8] sm:$0xff]
  %v1374 = vld [vmem:[%s11 + $0x2f0] sm:$0xff]
  %v1375 = vld [vmem:[%s11 + $0x2f8] sm:$0xff]
  %v1376 = vld [vmem:[%s12] sm:$0xff]
  %v1377 = vld [vmem:[%s12 + $0x8] sm:$0xf]
  %v1378 = vsel %vm178, %v1272, 0.0
  %v1379 = vrot.slane %v1378, 4
  %v1380 = vadd.f32 %v1378, %v1379
  %v1381 = vrot.slane %v1380, 2
  %v1382 = vadd.f32 %v1380, %v1381
  %v1383 = vrot.slane %v1382, 1
  %v1384 = vadd.f32 %v1382, %v1383
  %v1385 = vsel %vm178, %v1273, 0.0
  %v1386 = vrot.slane %v1385, 4
  %v1387 = vadd.f32 %v1385, %v1386
  %v1388 = vrot.slane %v1387, 2
  %v1389 = vadd.f32 %v1387, %v1388
  %v1390 = vrot.slane %v1389, 1
  %v1391 = vadd.f32 %v1389, %v1390
  %v1392 = vsel %vm178, %v1274, 0.0
  %v1393 = vrot.slane %v1392, 4
  %v1394 = vadd.f32 %v1392, %v1393
  %v1395 = vrot.slane %v1394, 2
  %v1396 = vadd.f32 %v1394, %v1395
  %v1397 = vrot.slane %v1396, 1
  %v1398 = vadd.f32 %v1396, %v1397
  %v1399 = vsel %vm178, %v1275, 0.0
  %v1400 = vrot.slane %v1399, 4
  %v1401 = vadd.f32 %v1399, %v1400
  %v1402 = vrot.slane %v1401, 2
  %v1403 = vadd.f32 %v1401, %v1402
  %v1404 = vrot.slane %v1403, 1
  %v1405 = vadd.f32 %v1403, %v1404
  %v1406 = vsel %vm178, %v1276, 0.0
  %v1407 = vrot.slane %v1406, 4
  %v1408 = vadd.f32 %v1406, %v1407
  %v1409 = vrot.slane %v1408, 2
  %v1410 = vadd.f32 %v1408, %v1409
  %v1411 = vrot.slane %v1410, 1
  %v1412 = vadd.f32 %v1410, %v1411
  %v1413 = vsel %vm178, %v1277, 0.0
  %v1414 = vrot.slane %v1413, 4
  %v1415 = vadd.f32 %v1413, %v1414
  %v1416 = vrot.slane %v1415, 2
  %v1417 = vadd.f32 %v1415, %v1416
  %v1418 = vrot.slane %v1417, 1
  %v1419 = vadd.f32 %v1417, %v1418
  %v1420 = vmul.f32 %v1272, %v1272
  %v1421 = vmul.f32 %v1273, %v1273
  %v1422 = vmul.f32 %v1274, %v1274
  %v1423 = vmul.f32 %v1275, %v1275
  %v1424 = vmul.f32 %v1276, %v1276
  %v1425 = vmul.f32 %v1277, %v1277
  %v1426 = vsel %vm178, %v1420, 0.0
  %v1427 = vrot.slane %v1426, 4
  %v1428 = vadd.f32 %v1426, %v1427
  %v1429 = vrot.slane %v1428, 2
  %v1430 = vadd.f32 %v1428, %v1429
  %v1431 = vrot.slane %v1430, 1
  %v1432 = vadd.f32 %v1430, %v1431
  %v1433 = vsel %vm178, %v1421, 0.0
  %v1434 = vrot.slane %v1433, 4
  %v1435 = vadd.f32 %v1433, %v1434
  %v1436 = vrot.slane %v1435, 2
  %v1437 = vadd.f32 %v1435, %v1436
  %v1438 = vrot.slane %v1437, 1
  %v1439 = vadd.f32 %v1437, %v1438
  %v1440 = vsel %vm178, %v1422, 0.0
  %v1441 = vrot.slane %v1440, 4
  %v1442 = vadd.f32 %v1440, %v1441
  %v1443 = vrot.slane %v1442, 2
  %v1444 = vadd.f32 %v1442, %v1443
  %v1445 = vrot.slane %v1444, 1
  %v1446 = vadd.f32 %v1444, %v1445
  %v1447 = vsel %vm178, %v1423, 0.0
  %v1448 = vrot.slane %v1447, 4
  %v1449 = vadd.f32 %v1447, %v1448
  %v1450 = vrot.slane %v1449, 2
  %v1451 = vadd.f32 %v1449, %v1450
  %v1452 = vrot.slane %v1451, 1
  %v1453 = vadd.f32 %v1451, %v1452
  %v1454 = vsel %vm178, %v1424, 0.0
  %v1455 = vrot.slane %v1454, 4
  %v1456 = vadd.f32 %v1454, %v1455
  %v1457 = vrot.slane %v1456, 2
  %v1458 = vadd.f32 %v1456, %v1457
  %v1459 = vrot.slane %v1458, 1
  %v1460 = vadd.f32 %v1458, %v1459
  %v1461 = vsel %vm178, %v1425, 0.0
  %v1462 = vrot.slane %v1461, 4
  %v1463 = vadd.f32 %v1461, %v1462
  %v1464 = vrot.slane %v1463, 2
  %v1465 = vadd.f32 %v1463, %v1464
  %v1466 = vrot.slane %v1465, 1
  %v1467 = vadd.f32 %v1465, %v1466
  %1468 = vmatprep.subr.mxu0 0.0
  %1469 = vmatpush1.msra.mxu0 %v1280
  %1470 = vmatprep.subr.mxu0 0.0
  %1471 = vmatpush1.msra.mxu0 %v1281
  %1472 = vmatprep.subr.mxu0 0.0
  %1473 = vmatpush1.msra.mxu0 %v1282
  %1474 = vmatprep.subr.mxu0 0.0
  %1475 = vmatpush1.msra.mxu0 %v1283
  %1476 = vmatprep.subr.mxu0 0.0
  %1477 = vmatpush1.msra.mxu0 %v1284
  %1478 = vmatprep.subr.mxu0 0.0
  %1479 = vmatpush1.msra.mxu0 %v1285
  %1480 = vmatprep.subr.mxu0 0.0
  %1481 = vmatpush1.msra.mxu0 %v1286
  %1482 = vmatprep.subr.mxu0 0.0
  %1483 = vmatpush1.msra.mxu0 %v1287
  %1484 = vmatprep.subr.mxu0 0.0
  %1485 = vmatpush1.msra.mxu0 %v1288
  %1486 = vmatprep.subr.mxu0 0.0
  %1487 = vmatpush1.msra.mxu0 %v1289
  %1488 = vmatprep.subr.mxu0 0.0
  %1489 = vmatpush1.msra.mxu0 %v1290
  %1490 = vmatprep.subr.mxu0 0.0
  %1491 = vmatpush1.msra.mxu0 %v1291
  %1492 = vmatprep.subr.mxu0 0.0
  %1493 = vmatpush1.msra.mxu0 %v1292
  %1494 = vmatprep.subr.mxu0 0.0
  %1495 = vmatpush1.msra.mxu0 %v1293
  %1496 = vmatprep.subr.mxu0 0.0
  %1497 = vmatpush1.msra.mxu0 %v1294
  %1498 = vmatprep.subr.mxu0 0.0
  %1499 = vmatpush1.msra.mxu0 %v1295
  %1500 = vmatprep.subr.mxu0 0.0
  %1501 = vmatpush1.msra.mxu0 %v1296
  %1502 = vmatprep.subr.mxu0 0.0
  %1503 = vmatpush1.msra.mxu0 %v1297
  %1504 = vmatprep.subr.mxu0 0.0
  %1505 = vmatpush1.msra.mxu0 %v1298
  %1506 = vmatprep.subr.mxu0 0.0
  %1507 = vmatpush1.msra.mxu0 %v1299
  %1508 = vmatprep.subr.mxu0 0.0
  %1509 = vmatpush1.msra.mxu0 %v1300
  %1510 = vmatprep.subr.mxu0 0.0
  %1511 = vmatpush1.msra.mxu0 %v1301
  %1512 = vmatprep.subr.mxu0 0.0
  %1513 = vmatpush1.msra.mxu0 %v1302
  %1514 = vmatprep.subr.mxu0 0.0
  %1515 = vmatpush1.msra.mxu0 %v1303
  %1516 = vmatprep.subr.mxu0 0.0
  %1517 = vmatpush1.msra.mxu0 %v1304
  %1518 = vmatprep.subr.mxu0 0.0
  %1519 = vmatpush1.msra.mxu0 %v1305
  %1520 = vmatprep.subr.mxu0 0.0
  %1521 = vmatpush1.msra.mxu0 %v1306
  %1522 = vmatprep.subr.mxu0 0.0
  %1523 = vmatpush1.msra.mxu0 %v1307
  %1524 = vmatprep.subr.mxu0 0.0
  %1525 = vmatpush1.msra.mxu0 %v1308
  %1526 = vmatprep.subr.mxu0 0.0
  %1527 = vmatpush1.msra.mxu0 %v1309
  %1528 = vmatprep.subr.mxu0 0.0
  %1529 = vmatpush1.msra.mxu0 %v1310
  %1530 = vmatprep.subr.mxu0 0.0
  %1531 = vmatpush1.msra.mxu0 %v1311
  %1532 = vmatprep.mubr.f32.mxu0 %v1391
  %1533 = vmatmul.mubr.f32.gmra.mrb[0].mxu0 %v1384
  %v1534 = vpop.f32.mrb[0].mxu0
  %v1535 = vadd.f32 0.0, %v1534
  %v1536 = vpop.f32.mrb[0].mxu0
  %1537 = vdwg.mxu0
  %1538 = vmatprep.subr.mxu0 0.0
  %1539 = vmatpush1.msra.mxu0 %v1312
  %1540 = vmatprep.subr.mxu0 0.0
  %1541 = vmatpush1.msra.mxu0 %v1313
  %1542 = vmatprep.subr.mxu0 0.0
  %1543 = vmatpush1.msra.mxu0 %v1314
  %1544 = vmatprep.subr.mxu0 0.0
  %1545 = vmatpush1.msra.mxu0 %v1315
  %1546 = vmatprep.subr.mxu0 0.0
  %1547 = vmatpush1.msra.mxu0 %v1316
  %1548 = vmatprep.subr.mxu0 0.0
  %1549 = vmatpush1.msra.mxu0 %v1317
  %1550 = vmatprep.subr.mxu0 0.0
  %1551 = vmatpush1.msra.mxu0 %v1318
  %1552 = vmatprep.subr.mxu0 0.0
  %1553 = vmatpush1.msra.mxu0 %v1319
  %1554 = vmatprep.subr.mxu0 0.0
  %1555 = vmatpush1.msra.mxu0 %v1320
  %1556 = vmatprep.subr.mxu0 0.0
  %1557 = vmatpush1.msra.mxu0 %v1321
  %1558 = vmatprep.subr.mxu0 0.0
  %1559 = vmatpush1.msra.mxu0 %v1322
  %1560 = vmatprep.subr.mxu0 0.0
  %1561 = vmatpush1.msra.mxu0 %v1323
  %1562 = vmatprep.subr.mxu0 0.0
  %1563 = vmatpush1.msra.mxu0 %v1324
  %1564 = vmatprep.subr.mxu0 0.0
  %1565 = vmatpush1.msra.mxu0 %v1325
  %1566 = vmatprep.subr.mxu0 0.0
  %1567 = vmatpush1.msra.mxu0 %v1326
  %1568 = vmatprep.subr.mxu0 0.0
  %1569 = vmatpush1.msra.mxu0 %v1327
  %1570 = vmatprep.subr.mxu0 0.0
  %1571 = vmatpush1.msra.mxu0 %v1328
  %1572 = vmatprep.subr.mxu0 0.0
  %1573 = vmatpush1.msra.mxu0 %v1329
  %1574 = vmatprep.subr.mxu0 0.0
  %1575 = vmatpush1.msra.mxu0 %v1330
  %1576 = vmatprep.subr.mxu0 0.0
  %1577 = vmatpush1.msra.mxu0 %v1331
  %1578 = vmatprep.subr.mxu0 0.0
  %1579 = vmatpush1.msra.mxu0 %v1332
  %1580 = vmatprep.subr.mxu0 0.0
  %1581 = vmatpush1.msra.mxu0 %v1333
  %1582 = vmatprep.subr.mxu0 0.0
  %1583 = vmatpush1.msra.mxu0 %v1334
  %1584 = vmatprep.subr.mxu0 0.0
  %1585 = vmatpush1.msra.mxu0 %v1335
  %1586 = vmatprep.subr.mxu0 0.0
  %1587 = vmatpush1.msra.mxu0 %v1336
  %1588 = vmatprep.subr.mxu0 0.0
  %1589 = vmatpush1.msra.mxu0 %v1337
  %1590 = vmatprep.subr.mxu0 0.0
  %1591 = vmatpush1.msra.mxu0 %v1338
  %1592 = vmatprep.subr.mxu0 0.0
  %1593 = vmatpush1.msra.mxu0 %v1339
  %1594 = vmatprep.subr.mxu0 0.0
  %1595 = vmatpush1.msra.mxu0 %v1340
  %1596 = vmatprep.subr.mxu0 0.0
  %1597 = vmatpush1.msra.mxu0 %v1341
  %1598 = vmatprep.subr.mxu0 0.0
  %1599 = vmatpush1.msra.mxu0 %v1342
  %1600 = vmatprep.subr.mxu0 0.0
  %1601 = vmatpush1.msra.mxu0 %v1343
  %1602 = vmatprep.mubr.f32.mxu0 %v1405
  %1603 = vmatmul.mubr.f32.gmra.mrb[0].mxu0 %v1398
  %v1604 = vpop.f32.mrb[0].mxu0
  %v1605 = vadd.f32 %v1535, %v1604
  %v1606 = vpop.f32.mrb[0].mxu0
  %1607 = vdwg.mxu0
  %1608 = vmatprep.subr.mxu0 0.0
  %1609 = vmatpush1.msra.mxu0 %v1344
  %1610 = vmatprep.subr.mxu0 0.0
  %1611 = vmatpush1.msra.mxu0 %v1345
  %1612 = vmatprep.subr.mxu0 0.0
  %1613 = vmatpush1.msra.mxu0 %v1346
  %1614 = vmatprep.subr.mxu0 0.0
  %1615 = vmatpush1.msra.mxu0 %v1347
  %1616 = vmatprep.subr.mxu0 0.0
  %1617 = vmatpush1.msra.mxu0 %v1348
  %1618 = vmatprep.subr.mxu0 0.0
  %1619 = vmatpush1.msra.mxu0 %v1349
  %1620 = vmatprep.subr.mxu0 0.0
  %1621 = vmatpush1.msra.mxu0 %v1350
  %1622 = vmatprep.subr.mxu0 0.0
  %1623 = vmatpush1.msra.mxu0 %v1351
  %1624 = vmatprep.subr.mxu0 0.0
  %1625 = vmatpush1.msra.mxu0 %v1352
  %1626 = vmatprep.subr.mxu0 0.0
  %1627 = vmatpush1.msra.mxu0 %v1353
  %1628 = vmatprep.subr.mxu0 0.0
  %1629 = vmatpush1.msra.mxu0 %v1354
  %1630 = vmatprep.subr.mxu0 0.0
  %1631 = vmatpush1.msra.mxu0 %v1355
  %1632 = vmatprep.subr.mxu0 0.0
  %1633 = vmatpush1.msra.mxu0 %v1356
  %1634 = vmatprep.subr.mxu0 0.0
  %1635 = vmatpush1.msra.mxu0 %v1357
  %1636 = vmatprep.subr.mxu0 0.0
  %1637 = vmatpush1.msra.mxu0 %v1358
  %1638 = vmatprep.subr.mxu0 0.0
  %1639 = vmatpush1.msra.mxu0 %v1359
  %1640 = vmatprep.subr.mxu0 0.0
  %1641 = vmatpush1.msra.mxu0 %v1360
  %1642 = vmatprep.subr.mxu0 0.0
  %1643 = vmatpush1.msra.mxu0 %v1361
  %1644 = vmatprep.subr.mxu0 0.0
  %1645 = vmatpush1.msra.mxu0 %v1362
  %1646 = vmatprep.subr.mxu0 0.0
  %1647 = vmatpush1.msra.mxu0 %v1363
  %1648 = vmatprep.subr.mxu0 0.0
  %1649 = vmatpush1.msra.mxu0 %v1364
  %1650 = vmatprep.subr.mxu0 0.0
  %1651 = vmatpush1.msra.mxu0 %v1365
  %1652 = vmatprep.subr.mxu0 0.0
  %1653 = vmatpush1.msra.mxu0 %v1366
  %1654 = vmatprep.subr.mxu0 0.0
  %1655 = vmatpush1.msra.mxu0 %v1367
  %1656 = vmatprep.subr.mxu0 0.0
  %1657 = vmatpush1.msra.mxu0 %v1368
  %1658 = vmatprep.subr.mxu0 0.0
  %1659 = vmatpush1.msra.mxu0 %v1369
  %1660 = vmatprep.subr.mxu0 0.0
  %1661 = vmatpush1.msra.mxu0 %v1370
  %1662 = vmatprep.subr.mxu0 0.0
  %1663 = vmatpush1.msra.mxu0 %v1371
  %1664 = vmatprep.subr.mxu0 0.0
  %1665 = vmatpush1.msra.mxu0 %v1372
  %1666 = vmatprep.subr.mxu0 0.0
  %1667 = vmatpush1.msra.mxu0 %v1373
  %1668 = vmatprep.subr.mxu0 0.0
  %1669 = vmatpush1.msra.mxu0 %v1374
  %1670 = vmatprep.subr.mxu0 0.0
  %1671 = vmatpush1.msra.mxu0 %v1375
  %1672 = vmatprep.mubr.f32.mxu0 %v1419
  %1673 = vmatmul.mubr.f32.gmra.mrb[0].mxu0 %v1412
  %v1674 = vpop.f32.mrb[0].mxu0
  %v1675 = vadd.f32 %v1605, %v1674
  %v1676 = vpop.f32.mrb[0].mxu0
  %1677 = vdwg.mxu0
  %v1678 = vmul.f32 %v1675, 0.5
  %1679 = vmatprep.subr.mxu0 0.0
  %1680 = vmatpush1.msra.mxu0 %v1280
  %1681 = vmatprep.subr.mxu0 0.0
  %1682 = vmatpush1.msra.mxu0 %v1281
  %1683 = vmatprep.subr.mxu0 0.0
  %1684 = vmatpush1.msra.mxu0 %v1282
  %1685 = vmatprep.subr.mxu0 0.0
  %1686 = vmatpush1.msra.mxu0 %v1283
  %1687 = vmatprep.subr.mxu0 0.0
  %1688 = vmatpush1.msra.mxu0 %v1284
  %1689 = vmatprep.subr.mxu0 0.0
  %1690 = vmatpush1.msra.mxu0 %v1285
  %1691 = vmatprep.subr.mxu0 0.0
  %1692 = vmatpush1.msra.mxu0 %v1286
  %1693 = vmatprep.subr.mxu0 0.0
  %1694 = vmatpush1.msra.mxu0 %v1287
  %1695 = vmatprep.subr.mxu0 0.0
  %1696 = vmatpush1.msra.mxu0 %v1288
  %1697 = vmatprep.subr.mxu0 0.0
  %1698 = vmatpush1.msra.mxu0 %v1289
  %1699 = vmatprep.subr.mxu0 0.0
  %1700 = vmatpush1.msra.mxu0 %v1290
  %1701 = vmatprep.subr.mxu0 0.0
  %1702 = vmatpush1.msra.mxu0 %v1291
  %1703 = vmatprep.subr.mxu0 0.0
  %1704 = vmatpush1.msra.mxu0 %v1292
  %1705 = vmatprep.subr.mxu0 0.0
  %1706 = vmatpush1.msra.mxu0 %v1293
  %1707 = vmatprep.subr.mxu0 0.0
  %1708 = vmatpush1.msra.mxu0 %v1294
  %1709 = vmatprep.subr.mxu0 0.0
  %1710 = vmatpush1.msra.mxu0 %v1295
  %1711 = vmatprep.subr.mxu0 0.0
  %1712 = vmatpush1.msra.mxu0 %v1296
  %1713 = vmatprep.subr.mxu0 0.0
  %1714 = vmatpush1.msra.mxu0 %v1297
  %1715 = vmatprep.subr.mxu0 0.0
  %1716 = vmatpush1.msra.mxu0 %v1298
  %1717 = vmatprep.subr.mxu0 0.0
  %1718 = vmatpush1.msra.mxu0 %v1299
  %1719 = vmatprep.subr.mxu0 0.0
  %1720 = vmatpush1.msra.mxu0 %v1300
  %1721 = vmatprep.subr.mxu0 0.0
  %1722 = vmatpush1.msra.mxu0 %v1301
  %1723 = vmatprep.subr.mxu0 0.0
  %1724 = vmatpush1.msra.mxu0 %v1302
  %1725 = vmatprep.subr.mxu0 0.0
  %1726 = vmatpush1.msra.mxu0 %v1303
  %1727 = vmatprep.subr.mxu0 0.0
  %1728 = vmatpush1.msra.mxu0 %v1304
  %1729 = vmatprep.subr.mxu0 0.0
  %1730 = vmatpush1.msra.mxu0 %v1305
  %1731 = vmatprep.subr.mxu0 0.0
  %1732 = vmatpush1.msra.mxu0 %v1306
  %1733 = vmatprep.subr.mxu0 0.0
  %1734 = vmatpush1.msra.mxu0 %v1307
  %1735 = vmatprep.subr.mxu0 0.0
  %1736 = vmatpush1.msra.mxu0 %v1308
  %1737 = vmatprep.subr.mxu0 0.0
  %1738 = vmatpush1.msra.mxu0 %v1309
  %1739 = vmatprep.subr.mxu0 0.0
  %1740 = vmatpush1.msra.mxu0 %v1310
  %1741 = vmatprep.subr.mxu0 0.0
  %1742 = vmatpush1.msra.mxu0 %v1311
  %1743 = vmatprep.mubr.f32.mxu0 %v1439
  %1744 = vmatmul.mubr.f32.gmra.mrb[0].mxu0 %v1432
  %v1745 = vpop.f32.mrb[0].mxu0
  %v1746 = vadd.f32 0.0, %v1745
  %v1747 = vpop.f32.mrb[0].mxu0
  %1748 = vdwg.mxu0
  %1749 = vmatprep.subr.mxu0 0.0
  %1750 = vmatpush1.msra.mxu0 %v1312
  %1751 = vmatprep.subr.mxu0 0.0
  %1752 = vmatpush1.msra.mxu0 %v1313
  %1753 = vmatprep.subr.mxu0 0.0
  %1754 = vmatpush1.msra.mxu0 %v1314
  %1755 = vmatprep.subr.mxu0 0.0
  %1756 = vmatpush1.msra.mxu0 %v1315
  %1757 = vmatprep.subr.mxu0 0.0
  %1758 = vmatpush1.msra.mxu0 %v1316
  %1759 = vmatprep.subr.mxu0 0.0
  %1760 = vmatpush1.msra.mxu0 %v1317
  %1761 = vmatprep.subr.mxu0 0.0
  %1762 = vmatpush1.msra.mxu0 %v1318
  %1763 = vmatprep.subr.mxu0 0.0
  %1764 = vmatpush1.msra.mxu0 %v1319
  %1765 = vmatprep.subr.mxu0 0.0
  %1766 = vmatpush1.msra.mxu0 %v1320
  %1767 = vmatprep.subr.mxu0 0.0
  %1768 = vmatpush1.msra.mxu0 %v1321
  %1769 = vmatprep.subr.mxu0 0.0
  %1770 = vmatpush1.msra.mxu0 %v1322
  %1771 = vmatprep.subr.mxu0 0.0
  %1772 = vmatpush1.msra.mxu0 %v1323
  %1773 = vmatprep.subr.mxu0 0.0
  %1774 = vmatpush1.msra.mxu0 %v1324
  %1775 = vmatprep.subr.mxu0 0.0
  %1776 = vmatpush1.msra.mxu0 %v1325
  %1777 = vmatprep.subr.mxu0 0.0
  %1778 = vmatpush1.msra.mxu0 %v1326
  %1779 = vmatprep.subr.mxu0 0.0
  %1780 = vmatpush1.msra.mxu0 %v1327
  %1781 = vmatprep.subr.mxu0 0.0
  %1782 = vmatpush1.msra.mxu0 %v1328
  %1783 = vmatprep.subr.mxu0 0.0
  %1784 = vmatpush1.msra.mxu0 %v1329
  %1785 = vmatprep.subr.mxu0 0.0
  %1786 = vmatpush1.msra.mxu0 %v1330
  %1787 = vmatprep.subr.mxu0 0.0
  %1788 = vmatpush1.msra.mxu0 %v1331
  %1789 = vmatprep.subr.mxu0 0.0
  %1790 = vmatpush1.msra.mxu0 %v1332
  %1791 = vmatprep.subr.mxu0 0.0
  %1792 = vmatpush1.msra.mxu0 %v1333
  %1793 = vmatprep.subr.mxu0 0.0
  %1794 = vmatpush1.msra.mxu0 %v1334
  %1795 = vmatprep.subr.mxu0 0.0
  %1796 = vmatpush1.msra.mxu0 %v1335
  %1797 = vmatprep.subr.mxu0 0.0
  %1798 = vmatpush1.msra.mxu0 %v1336
  %1799 = vmatprep.subr.mxu0 0.0
  %1800 = vmatpush1.msra.mxu0 %v1337
  %1801 = vmatprep.subr.mxu0 0.0
  %1802 = vmatpush1.msra.mxu0 %v1338
  %1803 = vmatprep.subr.mxu0 0.0
  %1804 = vmatpush1.msra.mxu0 %v1339
  %1805 = vmatprep.subr.mxu0 0.0
  %1806 = vmatpush1.msra.mxu0 %v1340
  %1807 = vmatprep.subr.mxu0 0.0
  %1808 = vmatpush1.msra.mxu0 %v1341
  %1809 = vmatprep.subr.mxu0 0.0
  %1810 = vmatpush1.msra.mxu0 %v1342
  %1811 = vmatprep.subr.mxu0 0.0
  %1812 = vmatpush1.msra.mxu0 %v1343
  %1813 = vmatprep.mubr.f32.mxu0 %v1453
  %1814 = vmatmul.mubr.f32.gmra.mrb[0].mxu0 %v1446
  %v1815 = vpop.f32.mrb[0].mxu0
  %v1816 = vadd.f32 %v1746, %v1815
  %v1817 = vpop.f32.mrb[0].mxu0
  %1818 = vdwg.mxu0
  %1819 = vmatprep.subr.mxu0 0.0
  %1820 = vmatpush1.msra.mxu0 %v1344
  %1821 = vmatprep.subr.mxu0 0.0
  %1822 = vmatpush1.msra.mxu0 %v1345
  %1823 = vmatprep.subr.mxu0 0.0
  %1824 = vmatpush1.msra.mxu0 %v1346
  %1825 = vmatprep.subr.mxu0 0.0
  %1826 = vmatpush1.msra.mxu0 %v1347
  %1827 = vmatprep.subr.mxu0 0.0
  %1828 = vmatpush1.msra.mxu0 %v1348
  %1829 = vmatprep.subr.mxu0 0.0
  %1830 = vmatpush1.msra.mxu0 %v1349
  %1831 = vmatprep.subr.mxu0 0.0
  %1832 = vmatpush1.msra.mxu0 %v1350
  %1833 = vmatprep.subr.mxu0 0.0
  %1834 = vmatpush1.msra.mxu0 %v1351
  %1835 = vmatprep.subr.mxu0 0.0
  %1836 = vmatpush1.msra.mxu0 %v1352
  %1837 = vmatprep.subr.mxu0 0.0
  %1838 = vmatpush1.msra.mxu0 %v1353
  %1839 = vmatprep.subr.mxu0 0.0
  %1840 = vmatpush1.msra.mxu0 %v1354
  %1841 = vmatprep.subr.mxu0 0.0
  %1842 = vmatpush1.msra.mxu0 %v1355
  %1843 = vmatprep.subr.mxu0 0.0
  %1844 = vmatpush1.msra.mxu0 %v1356
  %1845 = vmatprep.subr.mxu0 0.0
  %1846 = vmatpush1.msra.mxu0 %v1357
  %1847 = vmatprep.subr.mxu0 0.0
  %1848 = vmatpush1.msra.mxu0 %v1358
  %1849 = vmatprep.subr.mxu0 0.0
  %1850 = vmatpush1.msra.mxu0 %v1359
  %1851 = vmatprep.subr.mxu0 0.0
  %1852 = vmatpush1.msra.mxu0 %v1360
  %1853 = vmatprep.subr.mxu0 0.0
  %1854 = vmatpush1.msra.mxu0 %v1361
  %1855 = vmatprep.subr.mxu0 0.0
  %1856 = vmatpush1.msra.mxu0 %v1362
  %1857 = vmatprep.subr.mxu0 0.0
  %1858 = vmatpush1.msra.mxu0 %v1363
  %1859 = vmatprep.subr.mxu0 0.0
  %1860 = vmatpush1.msra.mxu0 %v1364
  %1861 = vmatprep.subr.mxu0 0.0
  %1862 = vmatpush1.msra.mxu0 %v1365
  %1863 = vmatprep.subr.mxu0 0.0
  %1864 = vmatpush1.msra.mxu0 %v1366
  %1865 = vmatprep.subr.mxu0 0.0
  %1866 = vmatpush1.msra.mxu0 %v1367
  %1867 = vmatprep.subr.mxu0 0.0
  %1868 = vmatpush1.msra.mxu0 %v1368
  %1869 = vmatprep.subr.mxu0 0.0
  %1870 = vmatpush1.msra.mxu0 %v1369
  %1871 = vmatprep.subr.mxu0 0.0
  %1872 = vmatpush1.msra.mxu0 %v1370
  %1873 = vmatprep.subr.mxu0 0.0
  %1874 = vmatpush1.msra.mxu0 %v1371
  %1875 = vmatprep.subr.mxu0 0.0
  %1876 = vmatpush1.msra.mxu0 %v1372
  %1877 = vmatprep.subr.mxu0 0.0
  %1878 = vmatpush1.msra.mxu0 %v1373
  %1879 = vmatprep.subr.mxu0 0.0
  %1880 = vmatpush1.msra.mxu0 %v1374
  %1881 = vmatprep.subr.mxu0 0.0
  %1882 = vmatpush1.msra.mxu0 %v1375
  %1883 = vmatprep.mubr.f32.mxu0 %v1467
  %1884 = vmatmul.mubr.f32.gmra.mrb[0].mxu0 %v1460
  %v1885 = vpop.f32.mrb[0].mxu0
  %v1886 = vadd.f32 %v1816, %v1885
  %v1887 = vpop.f32.mrb[0].mxu0
  %1888 = vdwg.mxu0
  %v1889 = vmul.f32 %v1886, 0.5
  %v1890 = vmul.f32 %v1678, %v1678
  %v1891 = vsub.f32 %v1889, %v1890
  %v1892 = vadd.f32 %v1891, 1e-05
  %v1893 = vrsqrt.pop %v1892
  %v1894 = vmul.f32 %v1893, %v1278
  %v1895 = vmul.f32 %v1678, %v1894
  %v1896 = vsub.f32 %v1279, %v1895
  %v1899 = vcombine.high %v1376, %v1376
  %v1901 = vunpack.c.l.s4 1983009808
  %v1902 = vunpack.c.0.s8 %v1901
  %v1903 = vlaneseq
  %v1904 = vshrl.u32 %v1903, 7
  %v1905 = vsub.s32 %v1902, %v1904
  %v1906 = vrot.slane %v1376, %v1905
  %v1908 = vunpack.c.l.s4 1983009808
  %v1909 = vunpack.c.0.s8 %v1908
  %v1910 = vlaneseq
  %v1911 = vshrl.u32 %v1910, 7
  %v1912 = vsub.s32 %v1909, %v1911
  %v1913 = vrot.slane %v1899, %v1912
  %v1914 = vcombine.high %v1906, %v1906
  %v1915 = vcombine.high %v1913, %v1913
  %v1917 = vunpack.c.l.s4 1983009808
  %v1918 = vunpack.c.0.s8 %v1917
  %v1919 = vlaneseq
  %v1920 = vshrl.u32 %v1919, 7
  %v1921 = vsub.s32 %v1918, %v1920
  %v1922 = vrot.slane %v1377, %v1921
  %v1923 = vcombine.high %v1922, %v1922
  %vm1924 = vcmask 15360
  %v1926 = vsel %vm1924, %v1894, 0
  %v1928 = vsel %vm178, %v1906, 0
  %v1930 = vsel %vm178, %v1914, 0
  %v1932 = vsel %vm178, %v1913, 0
  %v1934 = vsel %vm178, %v1915, 0
  %v1936 = vsel %vm178, %v1922, 0
  %v1938 = vsel %vm178, %v1923, 0
  %1940 = vmatprep.subr.mxu0 %v1930
  %1941 = vmatpush1.msra.mxu0 %v1928
  %1942 = vmatprep.subr.mxu0 0.0
  %1943 = vmatpush1.msra.mxu0 0.0
  %1944 = vmatprep.subr.mxu0 0.0
  %1945 = vmatpush1.msra.mxu0 0.0
  %1946 = vmatprep.subr.mxu0 0.0
  %1947 = vmatpush1.msra.mxu0 0.0
  %1948 = vmatprep.subr.mxu0 0.0
  %1949 = vmatpush1.msra.mxu0 0.0
  %1950 = vmatprep.subr.mxu0 0.0
  %1951 = vmatpush1.msra.mxu0 0.0
  %1952 = vmatprep.subr.mxu0 0.0
  %1953 = vmatpush1.msra.mxu0 0.0
  %1954 = vmatprep.subr.mxu0 0.0
  %1955 = vmatpush1.msra.mxu0 0.0
  %1956 = vmatprep.subr.mxu0 0.0
  %1957 = vmatpush1.msra.mxu0 0.0
  %1958 = vmatprep.subr.mxu0 0.0
  %1959 = vmatpush1.msra.mxu0 0.0
  %1960 = vmatprep.subr.mxu0 0.0
  %1961 = vmatpush1.msra.mxu0 0.0
  %1962 = vmatprep.subr.mxu0 0.0
  %1963 = vmatpush1.msra.mxu0 0.0
  %1964 = vmatprep.subr.mxu0 0.0
  %1965 = vmatpush1.msra.mxu0 0.0
  %1966 = vmatprep.subr.mxu0 0.0
  %1967 = vmatpush1.msra.mxu0 0.0
  %1968 = vmatprep.subr.mxu0 0.0
  %1969 = vmatpush1.msra.mxu0 0.0
  %1970 = vmatprep.subr.mxu0 0.0
  %1971 = vmatpush1.msra.mxu0 0.0
  %1972 = vmatprep.subr.mxu0 0.0
  %1973 = vmatpush1.msra.mxu0 0.0
  %1974 = vmatprep.subr.mxu0 0.0
  %1975 = vmatpush1.msra.mxu0 0.0
  %1976 = vmatprep.subr.mxu0 0.0
  %1977 = vmatpush1.msra.mxu0 0.0
  %1978 = vmatprep.subr.mxu0 0.0
  %1979 = vmatpush1.msra.mxu0 0.0
  %1980 = vmatprep.subr.mxu0 0.0
  %1981 = vmatpush1.msra.mxu0 0.0
  %1982 = vmatprep.subr.mxu0 0.0
  %1983 = vmatpush1.msra.mxu0 0.0
  %1984 = vmatprep.subr.mxu0 0.0
  %1985 = vmatpush1.msra.mxu0 0.0
  %1986 = vmatprep.subr.mxu0 0.0
  %1987 = vmatpush1.msra.mxu0 0.0
  %1988 = vmatprep.subr.mxu0 0.0
  %1989 = vmatpush1.msra.mxu0 0.0
  %1990 = vmatprep.subr.mxu0 0.0
  %1991 = vmatpush1.msra.mxu0 0.0
  %1992 = vmatprep.subr.mxu0 0.0
  %1993 = vmatpush1.msra.mxu0 0.0
  %1994 = vmatprep.subr.mxu0 0.0
  %1995 = vmatpush1.msra.mxu0 0.0
  %1996 = vmatprep.subr.mxu0 0.0
  %1997 = vmatpush1.msra.mxu0 0.0
  %1998 = vmatprep.subr.mxu0 0.0
  %1999 = vmatpush1.msra.mxu0 0.0
  %2000 = vmatprep.subr.mxu0 0.0
  %2001 = vmatpush1.msra.mxu0 0.0
  %2002 = vmatprep.subr.mxu0 0.0
  %2003 = vmatpush1.msra.mxu0 0.0
  %2004 = vmatprep.mubr.f32.mxu0 0.0
  %2005 = vmatmul.mubr.f32.gmra.mrb[0].mxu0 %v1926
  %v2006 = vpop.f32.mrb[0].mxu0
  %v2007 = vadd.f32 0.0, %v2006
  %v2008 = vpop.f32.mrb[0].mxu0
  %v2009 = vadd.f32 0.0, %v2008
  %2010 = vdwg.mxu0
  %2011 = vmatprep.subr.mxu0 %v1934
  %2012 = vmatpush1.msra.mxu0 %v1932
  %2013 = vmatprep.subr.mxu0 0.0
  %2014 = vmatpush1.msra.mxu0 0.0
  %2015 = vmatprep.subr.mxu0 0.0
  %2016 = vmatpush1.msra.mxu0 0.0
  %2017 = vmatprep.subr.mxu0 0.0
  %2018 = vmatpush1.msra.mxu0 0.0
  %2019 = vmatprep.subr.mxu0 0.0
  %2020 = vmatpush1.msra.mxu0 0.0
  %2021 = vmatprep.subr.mxu0 0.0
  %2022 = vmatpush1.msra.mxu0 0.0
  %2023 = vmatprep.subr.mxu0 0.0
  %2024 = vmatpush1.msra.mxu0 0.0
  %2025 = vmatprep.subr.mxu0 0.0
  %2026 = vmatpush1.msra.mxu0 0.0
  %2027 = vmatprep.subr.mxu0 0.0
  %2028 = vmatpush1.msra.mxu0 0.0
  %2029 = vmatprep.subr.mxu0 0.0
  %2030 = vmatpush1.msra.mxu0 0.0
  %2031 = vmatprep.subr.mxu0 0.0
  %2032 = vmatpush1.msra.mxu0 0.0
  %2033 = vmatprep.subr.mxu0 0.0
  %2034 = vmatpush1.msra.mxu0 0.0
  %2035 = vmatprep.subr.mxu0 0.0
  %2036 = vmatpush1.msra.mxu0 0.0
  %2037 = vmatprep.subr.mxu0 0.0
  %2038 = vmatpush1.msra.mxu0 0.0
  %2039 = vmatprep.subr.mxu0 0.0
  %2040 = vmatpush1.msra.mxu0 0.0
  %2041 = vmatprep.subr.mxu0 0.0
  %2042 = vmatpush1.msra.mxu0 0.0
  %2043 = vmatprep.subr.mxu0 0.0
  %2044 = vmatpush1.msra.mxu0 0.0
  %2045 = vmatprep.subr.mxu0 0.0
  %2046 = vmatpush1.msra.mxu0 0.0
  %2047 = vmatprep.subr.mxu0 0.0
  %2048 = vmatpush1.msra.mxu0 0.0
  %2049 = vmatprep.subr.mxu0 0.0
  %2050 = vmatpush1.msra.mxu0 0.0
  %2051 = vmatprep.subr.mxu0 0.0
  %2052 = vmatpush1.msra.mxu0 0.0
  %2053 = vmatprep.subr.mxu0 0.0
  %2054 = vmatpush1.msra.mxu0 0.0
  %2055 = vmatprep.subr.mxu0 0.0
  %2056 = vmatpush1.msra.mxu0 0.0
  %2057 = vmatprep.subr.mxu0 0.0
  %2058 = vmatpush1.msra.mxu0 0.0
  %2059 = vmatprep.subr.mxu0 0.0
  %2060 = vmatpush1.msra.mxu0 0.0
  %2061 = vmatprep.subr.mxu0 0.0
  %2062 = vmatpush1.msra.mxu0 0.0
  %2063 = vmatprep.subr.mxu0 0.0
  %2064 = vmatpush1.msra.mxu0 0.0
  %2065 = vmatprep.subr.mxu0 0.0
  %2066 = vmatpush1.msra.mxu0 0.0
  %2067 = vmatprep.subr.mxu0 0.0
  %2068 = vmatpush1.msra.mxu0 0.0
  %2069 = vmatprep.subr.mxu0 0.0
  %2070 = vmatpush1.msra.mxu0 0.0
  %2071 = vmatprep.subr.mxu0 0.0
  %2072 = vmatpush1.msra.mxu0 0.0
  %2073 = vmatprep.subr.mxu0 0.0
  %2074 = vmatpush1.msra.mxu0 0.0
  %2075 = vmatprep.mubr.f32.mxu0 0.0
  %2076 = vmatmul.mubr.f32.gmra.mrb[0].mxu0 %v1926
  %v2077 = vpop.f32.mrb[0].mxu0
  %v2078 = vadd.f32 0.0, %v2077
  %v2079 = vpop.f32.mrb[0].mxu0
  %v2080 = vadd.f32 0.0, %v2079
  %2081 = vdwg.mxu0
  %2082 = vmatprep.subr.mxu0 %v1938
  %2083 = vmatpush1.msra.mxu0 %v1936
  %2084 = vmatprep.subr.mxu0 0.0
  %2085 = vmatpush1.msra.mxu0 0.0
  %2086 = vmatprep.subr.mxu0 0.0
  %2087 = vmatpush1.msra.mxu0 0.0
  %2088 = vmatprep.subr.mxu0 0.0
  %2089 = vmatpush1.msra.mxu0 0.0
  %2090 = vmatprep.subr.mxu0 0.0
  %2091 = vmatpush1.msra.mxu0 0.0
  %2092 = vmatprep.subr.mxu0 0.0
  %2093 = vmatpush1.msra.mxu0 0.0
  %2094 = vmatprep.subr.mxu0 0.0
  %2095 = vmatpush1.msra.mxu0 0.0
  %2096 = vmatprep.subr.mxu0 0.0
  %2097 = vmatpush1.msra.mxu0 0.0
  %2098 = vmatprep.subr.mxu0 0.0
  %2099 = vmatpush1.msra.mxu0 0.0
  %2100 = vmatprep.subr.mxu0 0.0
  %2101 = vmatpush1.msra.mxu0 0.0
  %2102 = vmatprep.subr.mxu0 0.0
  %2103 = vmatpush1.msra.mxu0 0.0
  %2104 = vmatprep.subr.mxu0 0.0
  %2105 = vmatpush1.msra.mxu0 0.0
  %2106 = vmatprep.subr.mxu0 0.0
  %2107 = vmatpush1.msra.mxu0 0.0
  %2108 = vmatprep.subr.mxu0 0.0
  %2109 = vmatpush1.msra.mxu0 0.0
  %2110 = vmatprep.subr.mxu0 0.0
  %2111 = vmatpush1.msra.mxu0 0.0
  %2112 = vmatprep.subr.mxu0 0.0
  %2113 = vmatpush1.msra.mxu0 0.0
  %2114 = vmatprep.subr.mxu0 0.0
  %2115 = vmatpush1.msra.mxu0 0.0
  %2116 = vmatprep.subr.mxu0 0.0
  %2117 = vmatpush1.msra.mxu0 0.0
  %2118 = vmatprep.subr.mxu0 0.0
  %2119 = vmatpush1.msra.mxu0 0.0
  %2120 = vmatprep.subr.mxu0 0.0
  %2121 = vmatpush1.msra.mxu0 0.0
  %2122 = vmatprep.subr.mxu0 0.0
  %2123 = vmatpush1.msra.mxu0 0.0
  %2124 = vmatprep.subr.mxu0 0.0
  %2125 = vmatpush1.msra.mxu0 0.0
  %2126 = vmatprep.subr.mxu0 0.0
  %2127 = vmatpush1.msra.mxu0 0.0
  %2128 = vmatprep.subr.mxu0 0.0
  %2129 = vmatpush1.msra.mxu0 0.0
  %2130 = vmatprep.subr.mxu0 0.0
  %2131 = vmatpush1.msra.mxu0 0.0
  %2132 = vmatprep.subr.mxu0 0.0
  %2133 = vmatpush1.msra.mxu0 0.0
  %2134 = vmatprep.subr.mxu0 0.0
  %2135 = vmatpush1.msra.mxu0 0.0
  %2136 = vmatprep.subr.mxu0 0.0
  %2137 = vmatpush1.msra.mxu0 0.0
  %2138 = vmatprep.subr.mxu0 0.0
  %2139 = vmatpush1.msra.mxu0 0.0
  %2140 = vmatprep.subr.mxu0 0.0
  %2141 = vmatpush1.msra.mxu0 0.0
  %2142 = vmatprep.subr.mxu0 0.0
  %2143 = vmatpush1.msra.mxu0 0.0
  %2144 = vmatprep.subr.mxu0 0.0
  %2145 = vmatpush1.msra.mxu0 0.0
  %2146 = vmatprep.mubr.f32.mxu0 0.0
  %2147 = vmatmul.mubr.f32.gmra.mrb[0].mxu0 %v1926
  %v2148 = vpop.f32.mrb[0].mxu0
  %v2149 = vadd.f32 0.0, %v2148
  %v2150 = vpop.f32.mrb[0].mxu0
  %v2151 = vadd.f32 0.0, %v2150
  %2152 = vdwg.mxu0
  %v2154 = vsel %vm1924, %v1896, 0
  %2156 = vmatprep.subr.mxu0 %v1930
  %2157 = vmatpush1.msra.mxu0 %v1928
  %2158 = vmatprep.subr.mxu0 0.0
  %2159 = vmatpush1.msra.mxu0 0.0
  %2160 = vmatprep.subr.mxu0 0.0
  %2161 = vmatpush1.msra.mxu0 0.0
  %2162 = vmatprep.subr.mxu0 0.0
  %2163 = vmatpush1.msra.mxu0 0.0
  %2164 = vmatprep.subr.mxu0 0.0
  %2165 = vmatpush1.msra.mxu0 0.0
  %2166 = vmatprep.subr.mxu0 0.0
  %2167 = vmatpush1.msra.mxu0 0.0
  %2168 = vmatprep.subr.mxu0 0.0
  %2169 = vmatpush1.msra.mxu0 0.0
  %2170 = vmatprep.subr.mxu0 0.0
  %2171 = vmatpush1.msra.mxu0 0.0
  %2172 = vmatprep.subr.mxu0 0.0
  %2173 = vmatpush1.msra.mxu0 0.0
  %2174 = vmatprep.subr.mxu0 0.0
  %2175 = vmatpush1.msra.mxu0 0.0
  %2176 = vmatprep.subr.mxu0 0.0
  %2177 = vmatpush1.msra.mxu0 0.0
  %2178 = vmatprep.subr.mxu0 0.0
  %2179 = vmatpush1.msra.mxu0 0.0
  %2180 = vmatprep.subr.mxu0 0.0
  %2181 = vmatpush1.msra.mxu0 0.0
  %2182 = vmatprep.subr.mxu0 0.0
  %2183 = vmatpush1.msra.mxu0 0.0
  %2184 = vmatprep.subr.mxu0 0.0
  %2185 = vmatpush1.msra.mxu0 0.0
  %2186 = vmatprep.subr.mxu0 0.0
  %2187 = vmatpush1.msra.mxu0 0.0
  %2188 = vmatprep.subr.mxu0 0.0
  %2189 = vmatpush1.msra.mxu0 0.0
  %2190 = vmatprep.subr.mxu0 0.0
  %2191 = vmatpush1.msra.mxu0 0.0
  %2192 = vmatprep.subr.mxu0 0.0
  %2193 = vmatpush1.msra.mxu0 0.0
  %2194 = vmatprep.subr.mxu0 0.0
  %2195 = vmatpush1.msra.mxu0 0.0
  %2196 = vmatprep.subr.mxu0 0.0
  %2197 = vmatpush1.msra.mxu0 0.0
  %2198 = vmatprep.subr.mxu0 0.0
  %2199 = vmatpush1.msra.mxu0 0.0
  %2200 = vmatprep.subr.mxu0 0.0
  %2201 = vmatpush1.msra.mxu0 0.0
  %2202 = vmatprep.subr.mxu0 0.0
  %2203 = vmatpush1.msra.mxu0 0.0
  %2204 = vmatprep.subr.mxu0 0.0
  %2205 = vmatpush1.msra.mxu0 0.0
  %2206 = vmatprep.subr.mxu0 0.0
  %2207 = vmatpush1.msra.mxu0 0.0
  %2208 = vmatprep.subr.mxu0 0.0
  %2209 = vmatpush1.msra.mxu0 0.0
  %2210 = vmatprep.subr.mxu0 0.0
  %2211 = vmatpush1.msra.mxu0 0.0
  %2212 = vmatprep.subr.mxu0 0.0
  %2213 = vmatpush1.msra.mxu0 0.0
  %2214 = vmatprep.subr.mxu0 0.0
  %2215 = vmatpush1.msra.mxu0 0.0
  %2216 = vmatprep.subr.mxu0 0.0
  %2217 = vmatpush1.msra.mxu0 0.0
  %2218 = vmatprep.subr.mxu0 0.0
  %2219 = vmatpush1.msra.mxu0 0.0
  %2220 = vmatprep.mubr.f32.mxu0 0.0
  %2221 = vmatmul.mubr.f32.gmra.mrb[0].mxu0 %v2154
  %v2222 = vpop.f32.mrb[0].mxu0
  %v2223 = vadd.f32 0.0, %v2222
  %v2224 = vpop.f32.mrb[0].mxu0
  %v2225 = vadd.f32 0.0, %v2224
  %2226 = vdwg.mxu0
  %2227 = vmatprep.subr.mxu0 %v1934
  %2228 = vmatpush1.msra.mxu0 %v1932
  %2229 = vmatprep.subr.mxu0 0.0
  %2230 = vmatpush1.msra.mxu0 0.0
  %2231 = vmatprep.subr.mxu0 0.0
  %2232 = vmatpush1.msra.mxu0 0.0
  %2233 = vmatprep.subr.mxu0 0.0
  %2234 = vmatpush1.msra.mxu0 0.0
  %2235 = vmatprep.subr.mxu0 0.0
  %2236 = vmatpush1.msra.mxu0 0.0
  %2237 = vmatprep.subr.mxu0 0.0
  %2238 = vmatpush1.msra.mxu0 0.0
  %2239 = vmatprep.subr.mxu0 0.0
  %2240 = vmatpush1.msra.mxu0 0.0
  %2241 = vmatprep.subr.mxu0 0.0
  %2242 = vmatpush1.msra.mxu0 0.0
  %2243 = vmatprep.subr.mxu0 0.0
  %2244 = vmatpush1.msra.mxu0 0.0
  %2245 = vmatprep.subr.mxu0 0.0
  %2246 = vmatpush1.msra.mxu0 0.0
  %2247 = vmatprep.subr.mxu0 0.0
  %2248 = vmatpush1.msra.mxu0 0.0
  %2249 = vmatprep.subr.mxu0 0.0
  %2250 = vmatpush1.msra.mxu0 0.0
  %2251 = vmatprep.subr.mxu0 0.0
  %2252 = vmatpush1.msra.mxu0 0.0
  %2253 = vmatprep.subr.mxu0 0.0
  %2254 = vmatpush1.msra.mxu0 0.0
  %2255 = vmatprep.subr.mxu0 0.0
  %2256 = vmatpush1.msra.mxu0 0.0
  %2257 = vmatprep.subr.mxu0 0.0
  %2258 = vmatpush1.msra.mxu0 0.0
  %2259 = vmatprep.subr.mxu0 0.0
  %2260 = vmatpush1.msra.mxu0 0.0
  %2261 = vmatprep.subr.mxu0 0.0
  %2262 = vmatpush1.msra.mxu0 0.0
  %2263 = vmatprep.subr.mxu0 0.0
  %2264 = vmatpush1.msra.mxu0 0.0
  %2265 = vmatprep.subr.mxu0 0.0
  %2266 = vmatpush1.msra.mxu0 0.0
  %2267 = vmatprep.subr.mxu0 0.0
  %2268 = vmatpush1.msra.mxu0 0.0
  %2269 = vmatprep.subr.mxu0 0.0
  %2270 = vmatpush1.msra.mxu0 0.0
  %2271 = vmatprep.subr.mxu0 0.0
  %2272 = vmatpush1.msra.mxu0 0.0
  %2273 = vmatprep.subr.mxu0 0.0
  %2274 = vmatpush1.msra.mxu0 0.0
  %2275 = vmatprep.subr.mxu0 0.0
  %2276 = vmatpush1.msra.mxu0 0.0
  %2277 = vmatprep.subr.mxu0 0.0
  %2278 = vmatpush1.msra.mxu0 0.0
  %2279 = vmatprep.subr.mxu0 0.0
  %2280 = vmatpush1.msra.mxu0 0.0
  %2281 = vmatprep.subr.mxu0 0.0
  %2282 = vmatpush1.msra.mxu0 0.0
  %2283 = vmatprep.subr.mxu0 0.0
  %2284 = vmatpush1.msra.mxu0 0.0
  %2285 = vmatprep.subr.mxu0 0.0
  %2286 = vmatpush1.msra.mxu0 0.0
  %2287 = vmatprep.subr.mxu0 0.0
  %2288 = vmatpush1.msra.mxu0 0.0
  %2289 = vmatprep.subr.mxu0 0.0
  %2290 = vmatpush1.msra.mxu0 0.0
  %2291 = vmatprep.mubr.f32.mxu0 0.0
  %2292 = vmatmul.mubr.f32.gmra.mrb[0].mxu0 %v2154
  %v2293 = vpop.f32.mrb[0].mxu0
  %v2294 = vadd.f32 0.0, %v2293
  %v2295 = vpop.f32.mrb[0].mxu0
  %v2296 = vadd.f32 0.0, %v2295
  %2297 = vdwg.mxu0
  %2298 = vmatprep.subr.mxu0 %v1938
  %2299 = vmatpush1.msra.mxu0 %v1936
  %2300 = vmatprep.subr.mxu0 0.0
  %2301 = vmatpush1.msra.mxu0 0.0
  %2302 = vmatprep.subr.mxu0 0.0
  %2303 = vmatpush1.msra.mxu0 0.0
  %2304 = vmatprep.subr.mxu0 0.0
  %2305 = vmatpush1.msra.mxu0 0.0
  %2306 = vmatprep.subr.mxu0 0.0
  %2307 = vmatpush1.msra.mxu0 0.0
  %2308 = vmatprep.subr.mxu0 0.0
  %2309 = vmatpush1.msra.mxu0 0.0
  %2310 = vmatprep.subr.mxu0 0.0
  %2311 = vmatpush1.msra.mxu0 0.0
  %2312 = vmatprep.subr.mxu0 0.0
  %2313 = vmatpush1.msra.mxu0 0.0
  %2314 = vmatprep.subr.mxu0 0.0
  %2315 = vmatpush1.msra.mxu0 0.0
  %2316 = vmatprep.subr.mxu0 0.0
  %2317 = vmatpush1.msra.mxu0 0.0
  %2318 = vmatprep.subr.mxu0 0.0
  %2319 = vmatpush1.msra.mxu0 0.0
  %2320 = vmatprep.subr.mxu0 0.0
  %2321 = vmatpush1.msra.mxu0 0.0
  %2322 = vmatprep.subr.mxu0 0.0
  %2323 = vmatpush1.msra.mxu0 0.0
  %2324 = vmatprep.subr.mxu0 0.0
  %2325 = vmatpush1.msra.mxu0 0.0
  %2326 = vmatprep.subr.mxu0 0.0
  %2327 = vmatpush1.msra.mxu0 0.0
  %2328 = vmatprep.subr.mxu0 0.0
  %2329 = vmatpush1.msra.mxu0 0.0
  %2330 = vmatprep.subr.mxu0 0.0
  %2331 = vmatpush1.msra.mxu0 0.0
  %2332 = vmatprep.subr.mxu0 0.0
  %2333 = vmatpush1.msra.mxu0 0.0
  %2334 = vmatprep.subr.mxu0 0.0
  %2335 = vmatpush1.msra.mxu0 0.0
  %2336 = vmatprep.subr.mxu0 0.0
  %2337 = vmatpush1.msra.mxu0 0.0
  %2338 = vmatprep.subr.mxu0 0.0
  %2339 = vmatpush1.msra.mxu0 0.0
  %2340 = vmatprep.subr.mxu0 0.0
  %2341 = vmatpush1.msra.mxu0 0.0
  %2342 = vmatprep.subr.mxu0 0.0
  %2343 = vmatpush1.msra.mxu0 0.0
  %2344 = vmatprep.subr.mxu0 0.0
  %2345 = vmatpush1.msra.mxu0 0.0
  %2346 = vmatprep.subr.mxu0 0.0
  %2347 = vmatpush1.msra.mxu0 0.0
  %2348 = vmatprep.subr.mxu0 0.0
  %2349 = vmatpush1.msra.mxu0 0.0
  %2350 = vmatprep.subr.mxu0 0.0
  %2351 = vmatpush1.msra.mxu0 0.0
  %2352 = vmatprep.subr.mxu0 0.0
  %2353 = vmatpush1.msra.mxu0 0.0
  %2354 = vmatprep.subr.mxu0 0.0
  %2355 = vmatpush1.msra.mxu0 0.0
  %2356 = vmatprep.subr.mxu0 0.0
  %2357 = vmatpush1.msra.mxu0 0.0
  %2358 = vmatprep.subr.mxu0 0.0
  %2359 = vmatpush1.msra.mxu0 0.0
  %2360 = vmatprep.subr.mxu0 0.0
  %2361 = vmatpush1.msra.mxu0 0.0
  %2362 = vmatprep.mubr.f32.mxu0 0.0
  %2363 = vmatmul.mubr.f32.gmra.mrb[0].mxu0 %v2154
  %v2364 = vpop.f32.mrb[0].mxu0
  %v2365 = vadd.f32 0.0, %v2364
  %v2366 = vpop.f32.mrb[0].mxu0
  %v2367 = vadd.f32 0.0, %v2366
  %2368 = vdwg.mxu0
  %v2369 = vlaneseq
  %v2370 = vshrl.u32 %v2369, 7
  %v2371 = vsub.s32 0, %v2370
  %v2372 = vrot.slane %v2007, %v2371
  %v2373 = vlaneseq
  %v2374 = vshrl.u32 %v2373, 7
  %v2375 = vsub.s32 0, %v2374
  %v2376 = vrot.slane %v2009, %v2375
  %v2377 = vlaneseq
  %v2378 = vshrl.u32 %v2377, 7
  %v2379 = vsub.s32 0, %v2378
  %v2380 = vrot.slane %v2078, %v2379
  %v2381 = vlaneseq
  %v2382 = vshrl.u32 %v2381, 7
  %v2383 = vsub.s32 0, %v2382
  %v2384 = vrot.slane %v2080, %v2383
  %v2385 = vlaneseq
  %v2386 = vshrl.u32 %v2385, 7
  %v2387 = vsub.s32 0, %v2386
  %v2388 = vrot.slane %v2149, %v2387
  %v2389 = vlaneseq
  %v2390 = vshrl.u32 %v2389, 7
  %v2391 = vsub.s32 0, %v2390
  %v2392 = vrot.slane %v2151, %v2391
  %v2393 = vmul.f32 %v1272, %v2372
  %v2394 = vmul.f32 %v1273, %v2376
  %v2395 = vmul.f32 %v1274, %v2380
  %v2396 = vmul.f32 %v1275, %v2384
  %v2397 = vmul.f32 %v1276, %v2388
  %v2398 = vmul.f32 %v1277, %v2392
  %v2399 = vlaneseq
  %v2400 = vshrl.u32 %v2399, 7
  %v2401 = vsub.s32 0, %v2400
  %v2402 = vrot.slane %v2223, %v2401
  %v2403 = vlaneseq
  %v2404 = vshrl.u32 %v2403, 7
  %v2405 = vsub.s32 0, %v2404
  %v2406 = vrot.slane %v2225, %v2405
  %v2407 = vlaneseq
  %v2408 = vshrl.u32 %v2407, 7
  %v2409 = vsub.s32 0, %v2408
  %v2410 = vrot.slane %v2294, %v2409
  %v2411 = vlaneseq
  %v2412 = vshrl.u32 %v2411, 7
  %v2413 = vsub.s32 0, %v2412
  %v2414 = vrot.slane %v2296, %v2413
  %v2415 = vlaneseq
  %v2416 = vshrl.u32 %v2415, 7
  %v2417 = vsub.s32 0, %v2416
  %v2418 = vrot.slane %v2365, %v2417
  %v2419 = vlaneseq
  %v2420 = vshrl.u32 %v2419, 7
  %v2421 = vsub.s32 0, %v2420
  %v2422 = vrot.slane %v2367, %v2421
  %v2423 = vadd.f32 %v2393, %v2402
  %v2424 = vadd.f32 %v2394, %v2406
  %v2425 = vadd.f32 %v2395, %v2410
  %v2426 = vadd.f32 %v2396, %v2414
  %v2427 = vadd.f32 %v2397, %v2418
  %v2428 = vadd.f32 %v2398, %v2422
  %v2429 = vmin.f32 %v2423, 50.0
  %v2430 = vmin.f32 %v2424, 50.0
  %v2431 = vmin.f32 %v2425, 50.0
  %v2432 = vmin.f32 %v2426, 50.0
  %v2433 = vmin.f32 %v2427, 50.0
  %v2434 = vmin.f32 %v2428, 50.0
  %v2441 = vcombine.low %v2429, %v2430
  %v2442 = vcombine.low %v2431, %v2432
  %v2444 = vunpack.c.l.s4 1983009808
  %v2445 = vunpack.c.0.s8 %v2444
  %v2446 = vlaneseq
  %v2447 = vshrl.u32 %v2446, 7
  %v2448 = vsub.s32 %v2445, %v2447
  %v2449 = vrot.slane %v2441, %v2448
  %v2451 = vunpack.c.l.s4 1983009808
  %v2452 = vunpack.c.0.s8 %v2451
  %v2453 = vlaneseq
  %v2454 = vshrl.u32 %v2453, 7
  %v2455 = vsub.s32 %v2452, %v2454
  %v2456 = vrot.slane %v2442, %v2455
  %v2457 = vcombine.low %v2449, %v2456
  %v2458 = vcombine.low %v2433, %v2434
  %v2460 = vunpack.c.l.s4 1983009808
  %v2461 = vunpack.c.0.s8 %v2460
  %v2462 = vlaneseq
  %v2463 = vshrl.u32 %v2462, 7
  %v2464 = vsub.s32 %v2461, %v2463
  %v2465 = vrot.slane %v2458, %v2464
  %2468 = vst [vmem:[%s13] sm:$0xff] %v2457
  %2469 = vst [vmem:[%s13 + $0x8] sm:$0xf] %v2465
  // Predicated region
  $region54: #{image_decoder_3d_forward.1} parent=0 // pred_check
    _
  $region55: #{image_decoder_3d_forward.1} parent=0 // pred_check_branch
    %2471 = sbr.rel (0) target = $region57
  $region56: #{image_decoder_3d_forward.1} parent=0 // pred_region
    _
  $region57: #{image_decoder_3d_forward.1} parent=0 // pred_fallthru
    _
  // Predicated region
  $region58: #{image_decoder_3d_forward.1} parent=0 // pred_check
    _
  $region59: #{image_decoder_3d_forward.1} parent=0 // pred_check_branch
    %2473 = sbr.rel (0) target = $region61
  $region60: #{image_decoder_3d_forward.1} parent=0 // pred_region
    _
  $region61: #{image_decoder_3d_forward.1} parent=0 // pred_fallthru
    _

</llo_original>
